<compile_context>
chip_gen: v5e
topology: v5e:2x2
jax: 0.10.0
libtpu: 0.0.40
codegen_flags: <defaults>
</compile_context>

<pallas_src>
import functools
import math

import jax
import jax.numpy as jnp
from jax.experimental import pallas as pl
from jax.experimental.pallas import tpu as pltpu


def _gaussian_smearing_kernel(d_ref, e_ref, off_ref, out_ref, *, coeff):
    """One grid step: one lane-dense packed tile of Gaussian features.

    d_ref   : (tm, R)    f32   R logical distances per packed output row
    e_ref   : (3R, W)    bf16  replication matrix [E; E; E], W = R * num_gaussians
    off_ref : (1, W)     f32   tiled (offset - 1e-6) row
    out_ref : (tm, W)    f32   packed output tile
    """
    d = d_ref[...]
    # Exact 3-piece bf16 split of the f32 distances: d == d1 + d2 + d3 (24 mantissa
    # bits total), so a single-pass bf16 MXU matmul against the 0/1 matrix
    # reproduces each distance exactly in the f32 accumulator.
    d1 = d.astype(jnp.bfloat16)
    r1 = d - d1.astype(jnp.float32)
    d2 = r1.astype(jnp.bfloat16)
    d3 = (r1 - d2.astype(jnp.float32)).astype(jnp.bfloat16)
    d_cat = jnp.concatenate([d1, d2, d3], axis=-1)                     # (tm, 3R) bf16

    # MXU does the lane replication: d_rep[m, r*g + k] == d[m, r] exactly.
    d_rep = jnp.dot(d_cat, e_ref[...], preferred_element_type=jnp.float32)

    diff = d_rep - off_ref[...]          # == dist - offset + 1e-6 (eps folded into off)
    out_ref[...] = jnp.exp(coeff * (diff * diff))


def gaussian_smearing(dist, *, start=0.0, stop=5.0, num_gaussians=50,
                      rows_per_block=256):
    """Pallas implementation of GaussianSmearing.forward.

    dist: any-shaped array (flattened internally, like dist.view(-1, 1)).
    Returns (N, num_gaussians) float32 where N = dist.size.
    """
    g = int(num_gaussians)
    # TODO(synk): num_gaussians == 1 is ill-defined (step == 0), same as the PyTorch module.
    offset = jnp.linspace(float(start), float(stop), g, dtype=jnp.float32)
    step = (float(stop) - float(start)) / (g - 1)
    coeff = -0.5 / step ** 2

    # Pack R logical rows per output row so the packed row width W = R*g is a
    # multiple of 128 lanes (lane-dense stores / dense writeback DMA).
    # g=50 -> R=64, W=3200.
    R = 128 // math.gcd(g, 128)
    W = R * g

    flat = jnp.ravel(dist).astype(jnp.float32)
    n = flat.shape[0]
    align = R * 8                      # keep the packed-row count a multiple of 8
    n_pad = ((n + align - 1) // align) * align
    if n_pad != n:
        flat = jnp.pad(flat, (0, n_pad - n))
    m = n_pad // R
    d2 = flat.reshape(m, R)            # lane-major distance stream

    # Replication matrix E[r, r*g + k] = 1, stacked 3x for the bf16 split.
    eye_rep = jnp.kron(jnp.eye(R, dtype=jnp.float32),
                       jnp.ones((1, g), jnp.float32))                 # (R, W)
    e_cat = jnp.tile(eye_rep, (3, 1)).astype(jnp.bfloat16)            # (3R, W)

    # Tiled offsets with the +1e-6 shift folded in: off_row[r*g + k] = offset[k] - 1e-6.
    off_row = (jnp.tile(offset, (R,)) - 1e-6).reshape(1, W).astype(jnp.float32)

    # ~256 packed rows per step == 16384 logical rows (~3.1 MiB of output) to
    # amortize per-step pipeline overhead; total VMEM stays well under 32 MiB.
    tm = min(max(8, (int(rows_per_block) // 8) * 8), m)
    grid = (pl.cdiv(m, tm),)

    kernel = functools.partial(_gaussian_smearing_kernel, coeff=float(coeff))

    packed = pl.pallas_call(
        kernel,
        out_shape=jax.ShapeDtypeStruct((m, W), jnp.float32),
        grid=grid,
        in_specs=[
            pl.BlockSpec((tm, R), lambda i: (i, 0)),       # distances (tiny read stream)
            pl.BlockSpec((3 * R, W), lambda i: (0, 0)),    # replication matrix (resident)
            pl.BlockSpec((1, W), lambda i: (0, 0)),        # tiled offsets (resident)
        ],
        out_specs=pl.BlockSpec((tm, W), lambda i: (i, 0)),
        compiler_params=pltpu.CompilerParams(
            dimension_semantics=("parallel",),
            vmem_limit_bytes=32 * 1024 * 1024,
        ),
    )(d2, e_cat, off_row)

    # Free row-major metadata reshape; the [:n] slice only costs a copy when N
    # is not a multiple of the packing alignment.
    out = packed.reshape(n_pad, g)
    if n_pad != n:
        out = out[:n]
    return out


def _reference(dist, *, start=0.0, stop=5.0, num_gaussians=50):
    offset = jnp.linspace(start, stop, num_gaussians, dtype=jnp.float32)
    step = (float(stop) - float(start)) / (num_gaussians - 1)
    coeff = -0.5 / step ** 2
    d = dist.reshape(-1, 1).astype(jnp.float32) - offset.reshape(1, -1) + 1e-6
    return jnp.exp(coeff * d ** 2)


if __name__ == "__main__":
    key = jax.random.PRNGKey(0)
    k1, k2, k3 = jax.random.split(key, 3)

    # Case 1: small 2-D input (flattened internally, like dist.view(-1, 1)).
    dist1 = jax.random.uniform(k1, (2, 64), dtype=jnp.float32, minval=0.0, maxval=5.0)
    out1 = jax.block_until_ready(gaussian_smearing(dist1))
    ref1 = _reference(dist1)
    assert out1.shape == (dist1.size, 50)
    assert jnp.allclose(out1, ref1, atol=1e-5, rtol=1e-5)

    # Case 2: N not a multiple of the 64-row packing -> exercises the pad/slice path.
    dist2 = jax.random.uniform(k2, (200,), dtype=jnp.float32, minval=0.0, maxval=5.0)
    out2 = jax.block_until_ready(gaussian_smearing(dist2))
    ref2 = _reference(dist2)
    assert out2.shape == (200, 50)
    assert jnp.allclose(out2, ref2, atol=1e-5, rtol=1e-5)

    # Case 3: multi-step grid with a ragged last block (masked writeback path).
    dist3 = jax.random.uniform(k3, (5000,), dtype=jnp.float32, minval=0.0, maxval=5.0)
    out3 = jax.block_until_ready(gaussian_smearing(dist3, rows_per_block=24))
    ref3 = _reference(dist3)
    assert out3.shape == (5000, 50)
    assert jnp.allclose(out3, ref3, atol=1e-5, rtol=1e-5)

    print("KERNEL_OK")
</pallas_src>

<mosaic_0001>
module attributes {stable_mosaic.version = 11 : i64} {
  func.func @_gaussian_smearing_kernel(%arg0: i32, %arg1: memref<8x64xf32, #tpu.memory_space<vmem>>, %arg2: memref<192x3200xbf16, #tpu.memory_space<vmem>>, %arg3: memref<1x3200xf32, #tpu.memory_space<vmem>>, %arg4: memref<8x3200xf32, #tpu.memory_space<vmem>>) attributes {dimension_semantics = [#tpu.dimension_semantics<parallel>], iteration_bounds = array<i64: 1>, scalar_prefetch = 0 : i64, scratch_operands = 0 : i64, tpu.core_type = #tpu.core_type<tc>, window_params = [{transform_indices = @transform_0, window_bounds = array<i64: 8, 64>}, {pipeline_mode = #tpu.pipeline_mode<synchronous>, transform_indices = @transform_1, window_bounds = array<i64: 192, 3200>}, {pipeline_mode = #tpu.pipeline_mode<synchronous>, transform_indices = @transform_2, window_bounds = array<i64: 1, 3200>}, {transform_indices = @transform_3, window_bounds = array<i64: 8, 3200>}]} {
    %c0 = arith.constant 0 : index
    %c0_0 = arith.constant 0 : index
    %0 = vector.load %arg1[%c0, %c0_0] : memref<8x64xf32, #tpu.memory_space<vmem>>, vector<8x64xf32>
    %1 = arith.truncf %0 : vector<8x64xf32> to vector<8x64xbf16>
    %2 = arith.extf %1 : vector<8x64xbf16> to vector<8x64xf32>
    %3 = arith.subf %0, %2 : vector<8x64xf32>
    %4 = arith.truncf %3 : vector<8x64xf32> to vector<8x64xbf16>
    %5 = arith.extf %4 : vector<8x64xbf16> to vector<8x64xf32>
    %6 = arith.subf %3, %5 : vector<8x64xf32>
    %7 = arith.truncf %6 : vector<8x64xf32> to vector<8x64xbf16>
    %8 = tpu.concatenate %1, %4, %7 in 1 : vector<8x64xbf16>, vector<8x64xbf16>, vector<8x64xbf16> -> vector<8x192xbf16>
    %c0_1 = arith.constant 0 : index
    %c0_2 = arith.constant 0 : index
    %9 = vector.load %arg2[%c0_1, %c0_2] : memref<192x3200xbf16, #tpu.memory_space<vmem>>, vector<192x3200xbf16>
    %cst = arith.constant dense<0.000000e+00> : vector<8x3200xf32>
    %10 = tpu.matmul %8, %9, %cst {dimension_numbers = #tpu.dot_dimension_numbers<[1], [0], [0], [1], [0, 0, 1, 1], [], []>} : vector<8x192xbf16>, vector<192x3200xbf16>, vector<8x3200xf32> -> vector<8x3200xf32>
    %c0_3 = arith.constant 0 : index
    %c0_4 = arith.constant 0 : index
    %11 = vector.load %arg3[%c0_3, %c0_4] : memref<1x3200xf32, #tpu.memory_space<vmem>>, vector<1x3200xf32>
    %12 = vector.broadcast %11 : vector<1x3200xf32> to vector<8x3200xf32>
    %13 = arith.subf %10, %12 : vector<8x3200xf32>
    %14 = arith.mulf %13, %13 : vector<8x3200xf32>
    %cst_5 = arith.constant -4.802000e+01 : f32
    %15 = vector.broadcast %cst_5 : f32 to vector<8x3200xf32>
    %16 = arith.mulf %15, %14 : vector<8x3200xf32>
    %17 = math.exp %16 : vector<8x3200xf32>
    %c0_6 = arith.constant 0 : index
    %c0_7 = arith.constant 0 : index
    %18 = vector.load %arg4[%c0_6, %c0_7] : memref<8x3200xf32, #tpu.memory_space<vmem>>, vector<8x3200xf32>
    tpu.vector_store %arg4[%c0_6, %c0_7], %17 {strides = array<i32>} : memref<8x3200xf32, #tpu.memory_space<vmem>>, vector<8x3200xf32>,
    return
  }
  func.func @transform_0(%arg0: i32) -> (i32, i32) {
    %c0_i32 = arith.constant 0 : i32
    %c0_i32_0 = arith.constant 0 : i32
    return %arg0, %c0_i32 : i32, i32
  }
  func.func @transform_1(%arg0: i32) -> (i32, i32) {
    %c0_i32 = arith.constant 0 : i32
    %c0_i32_0 = arith.constant 0 : i32
    %c0_i32_1 = arith.constant 0 : i32
    return %c0_i32, %c0_i32_0 : i32, i32
  }
  func.func @transform_2(%arg0: i32) -> (i32, i32) {
    %c0_i32 = arith.constant 0 : i32
    %c0_i32_0 = arith.constant 0 : i32
    %c0_i32_1 = arith.constant 0 : i32
    return %c0_i32, %c0_i32_0 : i32, i32
  }
  func.func @transform_3(%arg0: i32) -> (i32, i32) {
    %c0_i32 = arith.constant 0 : i32
    %c0_i32_0 = arith.constant 0 : i32
    return %arg0, %c0_i32 : i32, i32
  }
}

</mosaic_0001>

<llo_original>
// kernel: tpu_custom_call.1
$region0: #{tpu_custom_call.1}
  #allocation0 [shape = 'u32[]', space=smem, size = 0x4, offset = 0x4, fixed_abs, tag = 'smem constant byte address 0x4 - core index']
  #allocation1 [shape = 'u32[72,128]{1,0:T(1,128)}', space=vmem, size = 0x9000, scoped, tag = 'internal scratch']
  %s0 = inlined_call_operand.hbm [shape: f32[8,64], index: 0, kind: input, shape index: {}]
  %s1 = inlined_call_operand.hbm [shape: bf16[192,3200], index: 1, kind: input, shape index: {}]
  %s2 = inlined_call_operand.hbm [shape: f32[1,3200], index: 2, kind: input, shape index: {}]
  %s3 = inlined_call_operand.hbm [shape: f32[8,3200], index: 3, kind: output, shape index: {}]
  %s4 = sld [smem:[#allocation0]]
  $region34: #{tpu_custom_call.1} parent=0
    _
  %s6 = ssub.s32 1, %s4
  %s7 = scalar_select 0, %s6, %s4
  $region1: #{tpu_custom_call.1} parent=0
    #allocation2 [shape = 'u8[4096]{0}', space=vmem, size = 0x1000, scoped, tag = 'input window, operand 0, single buffered']
    #allocation3 [shape = 's32[1]{0}', space=sflag, size = 0x4, scoped, tag = 'scoped memory for tpu_custom_call.1']
    #allocation4 [shape = 's32[1]{0}', space=sflag, size = 0x4, scoped, tag = 'scoped memory for tpu_custom_call.1']
    #allocation5 [shape = 'u8[1228800]{0}', space=vmem, size = 0x12c000, scoped, tag = 'input window, operand 1, single buffered']
    #allocation6 [shape = 's32[1]{0}', space=sflag, size = 0x4, scoped, tag = 'scoped memory for tpu_custom_call.1']
    #allocation7 [shape = 'u8[12800]{0}', space=vmem, size = 0x3400, scoped, tag = 'input window, operand 2, single buffered']
    #allocation8 [shape = 'u8[102400]{0}', space=vmem, size = 0x19000, scoped, tag = 'output window, operand 0, single buffered']
    %8 = vsyncpa [#allocation3], 0
    %9 = vsyncpa [#allocation6], 0
    %10 = vsyncpa [#allocation4], 0
    // Predicated region
    $region2: #{tpu_custom_call.1} parent=1 // pred_check
      _
    $region3: #{tpu_custom_call.1} parent=1 // pred_check_branch
      %12 = sbr.rel (0) target = $region5
    $region4: #{tpu_custom_call.1} parent=1 // pred_region
      %14 = vsyncadd [#allocation3], 0
      %s16 = sshll.u32 %s0, 4
      %s17 = int_to_ptr.hbm [resolvable:$true] %s16
      %s18 = sshll.u32 [#allocation2], 4
      %s19 = int_to_ptr.vmem [resolvable:$true] %s18
      %21 = dma.hbm_to_vmem [thread:$0]  %s17, 128, %s19, [#allocation3]
    $region5: #{tpu_custom_call.1} parent=1 // pred_fallthru
      _
    // Predicated region
    $region6: #{tpu_custom_call.1} parent=1 // pred_check
      _
    $region7: #{tpu_custom_call.1} parent=1 // pred_check_branch
      %23 = sbr.rel (0) target = $region9
    $region8: #{tpu_custom_call.1} parent=1 // pred_region
      %25 = vsyncadd [#allocation6], 0
      %s26 = sshll.u32 %s1, 4
      %s27 = int_to_ptr.hbm [resolvable:$true] %s26
      %s28 = sshll.u32 [#allocation5], 4
      %s29 = int_to_ptr.vmem [resolvable:$true] %s28
      %34 = dma.hbm_to_vmem [thread:$0]  %s27, 38400, %s29, [#allocation6], 1600, 1600, 100
    $region9: #{tpu_custom_call.1} parent=1 // pred_fallthru
      _
    // Predicated region
    $region10: #{tpu_custom_call.1} parent=1 // pred_check
      _
    $region11: #{tpu_custom_call.1} parent=1 // pred_check_branch
      %36 = sbr.rel (0) target = $region13
    $region12: #{tpu_custom_call.1} parent=1 // pred_region
      %38 = vsyncadd [#allocation6], 0
      %s40 = sshll.u32 %s2, 4
      %s41 = int_to_ptr.hbm [resolvable:$true] %s40
      %s42 = sshll.u32 [#allocation7], 4
      %s43 = int_to_ptr.vmem [resolvable:$true] %s42
      %45 = dma.hbm_to_vmem [thread:$0]  %s41, 400, %s43, [#allocation6]
    $region13: #{tpu_custom_call.1} parent=1 // pred_fallthru
      _
    // Predicated region
    $region14: #{tpu_custom_call.1} parent=1 // pred_check
      _
    $region15: #{tpu_custom_call.1} parent=1 // pred_check_branch
      %47 = sbr.rel (0) target = $region17
    $region16: #{tpu_custom_call.1} parent=1 // pred_region
      %49 = dma.done [#allocation3], 128
    $region17: #{tpu_custom_call.1} parent=1 // pred_fallthru
      _
    // Predicated region
    $region18: #{tpu_custom_call.1} parent=1 // pred_check
      _
    $region19: #{tpu_custom_call.1} parent=1 // pred_check_branch
      %51 = sbr.rel (0) target = $region21
    $region20: #{tpu_custom_call.1} parent=1 // pred_region
      %53 = dma.done [#allocation6], 38400
    $region21: #{tpu_custom_call.1} parent=1 // pred_fallthru
      _
    // Predicated region
    $region22: #{tpu_custom_call.1} parent=1 // pred_check
      _
    $region23: #{tpu_custom_call.1} parent=1 // pred_check_branch
      %55 = sbr.rel (0) target = $region25
    $region24: #{tpu_custom_call.1} parent=1 // pred_region
      %57 = dma.done [#allocation6], 400
    $region25: #{tpu_custom_call.1} parent=1 // pred_fallthru
      _
    %v59 = vld [vmem:[#allocation2] sm:$0xff]
    %v60 = vpack.c.bf16 %v59, %v59
    %v61 = vunpack.c.l.bf16 %v60
    %v62 = vsub.f32 %v59, %v61
    %v63 = vpack.c.bf16 %v62, %v62
    %v64 = vunpack.c.l.bf16 %v63
    %v65 = vsub.f32 %v62, %v64
    %v66 = vpack.c.bf16 %v65, %v65
    %v68 = vunpack.c.l.b16 %v63
    %v69 = vpack.c.b16 %v68, %v68
    %70 = vrot.lane.b32.xlu0 %v69, 64
    %v71 = vpop.permute.xlu0 %70
    %vm72 = vcmask 523264
    %v75 = vsel %vm72, %v60, %v71
    %v77 = vld [vmem:[#allocation5] sm:$0xff]
    %v78 = vld [vmem:[#allocation5 + $0x8] sm:$0xff]
    %v79 = vld [vmem:[#allocation5 + $0x10] sm:$0xff]
    %v80 = vld [vmem:[#allocation5 + $0x18] sm:$0xff]
    %v81 = vld [vmem:[#allocation5 + $0x20] sm:$0xff]
    %v82 = vld [vmem:[#allocation5 + $0x28] sm:$0xff]
    %v83 = vld [vmem:[#allocation5 + $0x30] sm:$0xff]
    %v84 = vld [vmem:[#allocation5 + $0x38] sm:$0xff]
    %v85 = vld [vmem:[#allocation5 + $0x40] sm:$0xff]
    %v86 = vld [vmem:[#allocation5 + $0x48] sm:$0xff]
    %v87 = vld [vmem:[#allocation5 + $0x50] sm:$0xff]
    %v88 = vld [vmem:[#allocation5 + $0x58] sm:$0xff]
    %v89 = vld [vmem:[#allocation5 + $0x60] sm:$0xf]
    %v90 = vld [vmem:[#allocation5 + $0x64] sm:$0xff]
    %v91 = vld [vmem:[#allocation5 + $0x6c] sm:$0xff]
    %v92 = vld [vmem:[#allocation5 + $0x74] sm:$0xff]
    %v93 = vld [vmem:[#allocation5 + $0x7c] sm:$0xff]
    %v94 = vld [vmem:[#allocation5 + $0x84] sm:$0xff]
    %v95 = vld [vmem:[#allocation5 + $0x8c] sm:$0xff]
    %v96 = vld [vmem:[#allocation5 + $0x94] sm:$0xff]
    %v97 = vld [vmem:[#allocation5 + $0x9c] sm:$0xff]
    %v98 = vld [vmem:[#allocation5 + $0xa4] sm:$0xff]
    %v99 = vld [vmem:[#allocation5 + $0xac] sm:$0xff]
    %v100 = vld [vmem:[#allocation5 + $0xb4] sm:$0xff]
    %v101 = vld [vmem:[#allocation5 + $0xbc] sm:$0xff]
    %v102 = vld [vmem:[#allocation5 + $0xc4] sm:$0xf]
    %v103 = vld [vmem:[#allocation5 + $0xc8] sm:$0xff]
    %v104 = vld [vmem:[#allocation5 + $0xd0] sm:$0xff]
    %v105 = vld [vmem:[#allocation5 + $0xd8] sm:$0xff]
    %v106 = vld [vmem:[#allocation5 + $0xe0] sm:$0xff]
    %v107 = vld [vmem:[#allocation5 + $0xe8] sm:$0xff]
    %v108 = vld [vmem:[#allocation5 + $0xf0] sm:$0xff]
    %v109 = vld [vmem:[#allocation5 + $0xf8] sm:$0xff]
    %v110 = vld [vmem:[#allocation5 + $0x100] sm:$0xff]
    %v111 = vld [vmem:[#allocation5 + $0x108] sm:$0xff]
    %v112 = vld [vmem:[#allocation5 + $0x110] sm:$0xff]
    %v113 = vld [vmem:[#allocation5 + $0x118] sm:$0xff]
    %v114 = vld [vmem:[#allocation5 + $0x120] sm:$0xff]
    %v115 = vld [vmem:[#allocation5 + $0x128] sm:$0xf]
    %v116 = vld [vmem:[#allocation5 + $0x12c] sm:$0xff]
    %v117 = vld [vmem:[#allocation5 + $0x134] sm:$0xff]
    %v118 = vld [vmem:[#allocation5 + $0x13c] sm:$0xff]
    %v119 = vld [vmem:[#allocation5 + $0x144] sm:$0xff]
    %v120 = vld [vmem:[#allocation5 + $0x14c] sm:$0xff]
    %v121 = vld [vmem:[#allocation5 + $0x154] sm:$0xff]
    %v122 = vld [vmem:[#allocation5 + $0x15c] sm:$0xff]
    %v123 = vld [vmem:[#allocation5 + $0x164] sm:$0xff]
    %v124 = vld [vmem:[#allocation5 + $0x16c] sm:$0xff]
    %v125 = vld [vmem:[#allocation5 + $0x174] sm:$0xff]
    %v126 = vld [vmem:[#allocation5 + $0x17c] sm:$0xff]
    %v127 = vld [vmem:[#allocation5 + $0x184] sm:$0xff]
    %v128 = vld [vmem:[#allocation5 + $0x18c] sm:$0xf]
    %v129 = vld [vmem:[#allocation5 + $0x190] sm:$0xff]
    %v130 = vld [vmem:[#allocation5 + $0x198] sm:$0xff]
    %v131 = vld [vmem:[#allocation5 + $0x1a0] sm:$0xff]
    %v132 = vld [vmem:[#allocation5 + $0x1a8] sm:$0xff]
    %v133 = vld [vmem:[#allocation5 + $0x1b0] sm:$0xff]
    %v134 = vld [vmem:[#allocation5 + $0x1b8] sm:$0xff]
    %v135 = vld [vmem:[#allocation5 + $0x1c0] sm:$0xff]
    %v136 = vld [vmem:[#allocation5 + $0x1c8] sm:$0xff]
    %v137 = vld [vmem:[#allocation5 + $0x1d0] sm:$0xff]
    %v138 = vld [vmem:[#allocation5 + $0x1d8] sm:$0xff]
    %v139 = vld [vmem:[#allocation5 + $0x1e0] sm:$0xff]
    %v140 = vld [vmem:[#allocation5 + $0x1e8] sm:$0xff]
    %v141 = vld [vmem:[#allocation5 + $0x1f0] sm:$0xf]
    %v142 = vld [vmem:[#allocation5 + $0x1f4] sm:$0xff]
    %v143 = vld [vmem:[#allocation5 + $0x1fc] sm:$0xff]
    %v144 = vld [vmem:[#allocation5 + $0x204] sm:$0xff]
    %v145 = vld [vmem:[#allocation5 + $0x20c] sm:$0xff]
    %v146 = vld [vmem:[#allocation5 + $0x214] sm:$0xff]
    %v147 = vld [vmem:[#allocation5 + $0x21c] sm:$0xff]
    %v148 = vld [vmem:[#allocation5 + $0x224] sm:$0xff]
    %v149 = vld [vmem:[#allocation5 + $0x22c] sm:$0xff]
    %v150 = vld [vmem:[#allocation5 + $0x234] sm:$0xff]
    %v151 = vld [vmem:[#allocation5 + $0x23c] sm:$0xff]
    %v152 = vld [vmem:[#allocation5 + $0x244] sm:$0xff]
    %v153 = vld [vmem:[#allocation5 + $0x24c] sm:$0xff]
    %v154 = vld [vmem:[#allocation5 + $0x254] sm:$0xf]
    %v155 = vld [vmem:[#allocation5 + $0x258] sm:$0xff]
    %v156 = vld [vmem:[#allocation5 + $0x260] sm:$0xff]
    %v157 = vld [vmem:[#allocation5 + $0x268] sm:$0xff]
    %v158 = vld [vmem:[#allocation5 + $0x270] sm:$0xff]
    %v159 = vld [vmem:[#allocation5 + $0x278] sm:$0xff]
    %v160 = vld [vmem:[#allocation5 + $0x280] sm:$0xff]
    %v161 = vld [vmem:[#allocation5 + $0x288] sm:$0xff]
    %v162 = vld [vmem:[#allocation5 + $0x290] sm:$0xff]
    %v163 = vld [vmem:[#allocation5 + $0x298] sm:$0xff]
    %v164 = vld [vmem:[#allocation5 + $0x2a0] sm:$0xff]
    %v165 = vld [vmem:[#allocation5 + $0x2a8] sm:$0xff]
    %v166 = vld [vmem:[#allocation5 + $0x2b0] sm:$0xff]
    %v167 = vld [vmem:[#allocation5 + $0x2b8] sm:$0xf]
    %v168 = vld [vmem:[#allocation5 + $0x2bc] sm:$0xff]
    %v169 = vld [vmem:[#allocation5 + $0x2c4] sm:$0xff]
    %v170 = vld [vmem:[#allocation5 + $0x2cc] sm:$0xff]
    %v171 = vld [vmem:[#allocation5 + $0x2d4] sm:$0xff]
    %v172 = vld [vmem:[#allocation5 + $0x2dc] sm:$0xff]
    %v173 = vld [vmem:[#allocation5 + $0x2e4] sm:$0xff]
    %v174 = vld [vmem:[#allocation5 + $0x2ec] sm:$0xff]
    %v175 = vld [vmem:[#allocation5 + $0x2f4] sm:$0xff]
    %v176 = vld [vmem:[#allocation5 + $0x2fc] sm:$0xff]
    %v177 = vld [vmem:[#allocation5 + $0x304] sm:$0xff]
    %v178 = vld [vmem:[#allocation5 + $0x30c] sm:$0xff]
    %v179 = vld [vmem:[#allocation5 + $0x314] sm:$0xff]
    %v180 = vld [vmem:[#allocation5 + $0x31c] sm:$0xf]
    %v181 = vld [vmem:[#allocation5 + $0x320] sm:$0xff]
    %v182 = vld [vmem:[#allocation5 + $0x328] sm:$0xff]
    %v183 = vld [vmem:[#allocation5 + $0x330] sm:$0xff]
    %v184 = vld [vmem:[#allocation5 + $0x338] sm:$0xff]
    %v185 = vld [vmem:[#allocation5 + $0x340] sm:$0xff]
    %v186 = vld [vmem:[#allocation5 + $0x348] sm:$0xff]
    %v187 = vld [vmem:[#allocation5 + $0x350] sm:$0xff]
    %v188 = vld [vmem:[#allocation5 + $0x358] sm:$0xff]
    %v189 = vld [vmem:[#allocation5 + $0x360] sm:$0xff]
    %v190 = vld [vmem:[#allocation5 + $0x368] sm:$0xff]
    %v191 = vld [vmem:[#allocation5 + $0x370] sm:$0xff]
    %v192 = vld [vmem:[#allocation5 + $0x378] sm:$0xff]
    %v193 = vld [vmem:[#allocation5 + $0x380] sm:$0xf]
    %v194 = vld [vmem:[#allocation5 + $0x384] sm:$0xff]
    %v195 = vld [vmem:[#allocation5 + $0x38c] sm:$0xff]
    %v196 = vld [vmem:[#allocation5 + $0x394] sm:$0xff]
    %v197 = vld [vmem:[#allocation5 + $0x39c] sm:$0xff]
    %v198 = vld [vmem:[#allocation5 + $0x3a4] sm:$0xff]
    %v199 = vld [vmem:[#allocation5 + $0x3ac] sm:$0xff]
    %v200 = vld [vmem:[#allocation5 + $0x3b4] sm:$0xff]
    %v201 = vld [vmem:[#allocation5 + $0x3bc] sm:$0xff]
    %v202 = vld [vmem:[#allocation5 + $0x3c4] sm:$0xff]
    %v203 = vld [vmem:[#allocation5 + $0x3cc] sm:$0xff]
    %v204 = vld [vmem:[#allocation5 + $0x3d4] sm:$0xff]
    %v205 = vld [vmem:[#allocation5 + $0x3dc] sm:$0xff]
    %v206 = vld [vmem:[#allocation5 + $0x3e4] sm:$0xf]
    %v207 = vld [vmem:[#allocation5 + $0x3e8] sm:$0xff]
    %v208 = vld [vmem:[#allocation5 + $0x3f0] sm:$0xff]
    %v209 = vld [vmem:[#allocation5 + $0x3f8] sm:$0xff]
    %v210 = vld [vmem:[#allocation5 + $0x400] sm:$0xff]
    %v211 = vld [vmem:[#allocation5 + $0x408] sm:$0xff]
    %v212 = vld [vmem:[#allocation5 + $0x410] sm:$0xff]
    %v213 = vld [vmem:[#allocation5 + $0x418] sm:$0xff]
    %v214 = vld [vmem:[#allocation5 + $0x420] sm:$0xff]
    %v215 = vld [vmem:[#allocation5 + $0x428] sm:$0xff]
    %v216 = vld [vmem:[#allocation5 + $0x430] sm:$0xff]
    %v217 = vld [vmem:[#allocation5 + $0x438] sm:$0xff]
    %v218 = vld [vmem:[#allocation5 + $0x440] sm:$0xff]
    %v219 = vld [vmem:[#allocation5 + $0x448] sm:$0xf]
    %v220 = vld [vmem:[#allocation5 + $0x44c] sm:$0xff]
    %v221 = vld [vmem:[#allocation5 + $0x454] sm:$0xff]
    %v222 = vld [vmem:[#allocation5 + $0x45c] sm:$0xff]
    %v223 = vld [vmem:[#allocation5 + $0x464] sm:$0xff]
    %v224 = vld [vmem:[#allocation5 + $0x46c] sm:$0xff]
    %v225 = vld [vmem:[#allocation5 + $0x474] sm:$0xff]
    %v226 = vld [vmem:[#allocation5 + $0x47c] sm:$0xff]
    %v227 = vld [vmem:[#allocation5 + $0x484] sm:$0xff]
    %v228 = vld [vmem:[#allocation5 + $0x48c] sm:$0xff]
    %v229 = vld [vmem:[#allocation5 + $0x494] sm:$0xff]
    %v230 = vld [vmem:[#allocation5 + $0x49c] sm:$0xff]
    %v231 = vld [vmem:[#allocation5 + $0x4a4] sm:$0xff]
    %v232 = vld [vmem:[#allocation5 + $0x4ac] sm:$0xf]
    %v233 = vld [vmem:[#allocation5 + $0x4b0] sm:$0xff]
    %v234 = vld [vmem:[#allocation5 + $0x4b8] sm:$0xff]
    %v235 = vld [vmem:[#allocation5 + $0x4c0] sm:$0xff]
    %v236 = vld [vmem:[#allocation5 + $0x4c8] sm:$0xff]
    %v237 = vld [vmem:[#allocation5 + $0x4d0] sm:$0xff]
    %v238 = vld [vmem:[#allocation5 + $0x4d8] sm:$0xff]
    %v239 = vld [vmem:[#allocation5 + $0x4e0] sm:$0xff]
    %v240 = vld [vmem:[#allocation5 + $0x4e8] sm:$0xff]
    %v241 = vld [vmem:[#allocation5 + $0x4f0] sm:$0xff]
    %v242 = vld [vmem:[#allocation5 + $0x4f8] sm:$0xff]
    %v243 = vld [vmem:[#allocation5 + $0x500] sm:$0xff]
    %v244 = vld [vmem:[#allocation5 + $0x508] sm:$0xff]
    %v245 = vld [vmem:[#allocation5 + $0x510] sm:$0xf]
    %v246 = vld [vmem:[#allocation5 + $0x514] sm:$0xff]
    %v247 = vld [vmem:[#allocation5 + $0x51c] sm:$0xff]
    %v248 = vld [vmem:[#allocation5 + $0x524] sm:$0xff]
    %v249 = vld [vmem:[#allocation5 + $0x52c] sm:$0xff]
    %v250 = vld [vmem:[#allocation5 + $0x534] sm:$0xff]
    %v251 = vld [vmem:[#allocation5 + $0x53c] sm:$0xff]
    %v252 = vld [vmem:[#allocation5 + $0x544] sm:$0xff]
    %v253 = vld [vmem:[#allocation5 + $0x54c] sm:$0xff]
    %v254 = vld [vmem:[#allocation5 + $0x554] sm:$0xff]
    %v255 = vld [vmem:[#allocation5 + $0x55c] sm:$0xff]
    %v256 = vld [vmem:[#allocation5 + $0x564] sm:$0xff]
    %v257 = vld [vmem:[#allocation5 + $0x56c] sm:$0xff]
    %v258 = vld [vmem:[#allocation5 + $0x574] sm:$0xf]
    %v259 = vld [vmem:[#allocation5 + $0x578] sm:$0xff]
    %v260 = vld [vmem:[#allocation5 + $0x580] sm:$0xff]
    %v261 = vld [vmem:[#allocation5 + $0x588] sm:$0xff]
    %v262 = vld [vmem:[#allocation5 + $0x590] sm:$0xff]
    %v263 = vld [vmem:[#allocation5 + $0x598] sm:$0xff]
    %v264 = vld [vmem:[#allocation5 + $0x5a0] sm:$0xff]
    %v265 = vld [vmem:[#allocation5 + $0x5a8] sm:$0xff]
    %v266 = vld [vmem:[#allocation5 + $0x5b0] sm:$0xff]
    %v267 = vld [vmem:[#allocation5 + $0x5b8] sm:$0xff]
    %v268 = vld [vmem:[#allocation5 + $0x5c0] sm:$0xff]
    %v269 = vld [vmem:[#allocation5 + $0x5c8] sm:$0xff]
    %v270 = vld [vmem:[#allocation5 + $0x5d0] sm:$0xff]
    %v271 = vld [vmem:[#allocation5 + $0x5d8] sm:$0xf]
    %v272 = vld [vmem:[#allocation5 + $0x5dc] sm:$0xff]
    %v273 = vld [vmem:[#allocation5 + $0x5e4] sm:$0xff]
    %v274 = vld [vmem:[#allocation5 + $0x5ec] sm:$0xff]
    %v275 = vld [vmem:[#allocation5 + $0x5f4] sm:$0xff]
    %v276 = vld [vmem:[#allocation5 + $0x5fc] sm:$0xff]
    %v277 = vld [vmem:[#allocation5 + $0x604] sm:$0xff]
    %v278 = vld [vmem:[#allocation5 + $0x60c] sm:$0xff]
    %v279 = vld [vmem:[#allocation5 + $0x614] sm:$0xff]
    %v280 = vld [vmem:[#allocation5 + $0x61c] sm:$0xff]
    %v281 = vld [vmem:[#allocation5 + $0x624] sm:$0xff]
    %v282 = vld [vmem:[#allocation5 + $0x62c] sm:$0xff]
    %v283 = vld [vmem:[#allocation5 + $0x634] sm:$0xff]
    %v284 = vld [vmem:[#allocation5 + $0x63c] sm:$0xf]
    %v285 = vld [vmem:[#allocation5 + $0x640] sm:$0xff]
    %v286 = vld [vmem:[#allocation5 + $0x648] sm:$0xff]
    %v287 = vld [vmem:[#allocation5 + $0x650] sm:$0xff]
    %v288 = vld [vmem:[#allocation5 + $0x658] sm:$0xff]
    %v289 = vld [vmem:[#allocation5 + $0x660] sm:$0xff]
    %v290 = vld [vmem:[#allocation5 + $0x668] sm:$0xff]
    %v291 = vld [vmem:[#allocation5 + $0x670] sm:$0xff]
    %v292 = vld [vmem:[#allocation5 + $0x678] sm:$0xff]
    %v293 = vld [vmem:[#allocation5 + $0x680] sm:$0xff]
    %v294 = vld [vmem:[#allocation5 + $0x688] sm:$0xff]
    %v295 = vld [vmem:[#allocation5 + $0x690] sm:$0xff]
    %v296 = vld [vmem:[#allocation5 + $0x698] sm:$0xff]
    %v297 = vld [vmem:[#allocation5 + $0x6a0] sm:$0xf]
    %v298 = vld [vmem:[#allocation5 + $0x6a4] sm:$0xff]
    %v299 = vld [vmem:[#allocation5 + $0x6ac] sm:$0xff]
    %v300 = vld [vmem:[#allocation5 + $0x6b4] sm:$0xff]
    %v301 = vld [vmem:[#allocation5 + $0x6bc] sm:$0xff]
    %v302 = vld [vmem:[#allocation5 + $0x6c4] sm:$0xff]
    %v303 = vld [vmem:[#allocation5 + $0x6cc] sm:$0xff]
    %v304 = vld [vmem:[#allocation5 + $0x6d4] sm:$0xff]
    %v305 = vld [vmem:[#allocation5 + $0x6dc] sm:$0xff]
    %v306 = vld [vmem:[#allocation5 + $0x6e4] sm:$0xff]
    %v307 = vld [vmem:[#allocation5 + $0x6ec] sm:$0xff]
    %v308 = vld [vmem:[#allocation5 + $0x6f4] sm:$0xff]
    %v309 = vld [vmem:[#allocation5 + $0x6fc] sm:$0xff]
    %v310 = vld [vmem:[#allocation5 + $0x704] sm:$0xf]
    %v311 = vld [vmem:[#allocation5 + $0x708] sm:$0xff]
    %v312 = vld [vmem:[#allocation5 + $0x710] sm:$0xff]
    %v313 = vld [vmem:[#allocation5 + $0x718] sm:$0xff]
    %v314 = vld [vmem:[#allocation5 + $0x720] sm:$0xff]
    %v315 = vld [vmem:[#allocation5 + $0x728] sm:$0xff]
    %v316 = vld [vmem:[#allocation5 + $0x730] sm:$0xff]
    %v317 = vld [vmem:[#allocation5 + $0x738] sm:$0xff]
    %v318 = vld [vmem:[#allocation5 + $0x740] sm:$0xff]
    %v319 = vld [vmem:[#allocation5 + $0x748] sm:$0xff]
    %v320 = vld [vmem:[#allocation5 + $0x750] sm:$0xff]
    %v321 = vld [vmem:[#allocation5 + $0x758] sm:$0xff]
    %v322 = vld [vmem:[#allocation5 + $0x760] sm:$0xff]
    %v323 = vld [vmem:[#allocation5 + $0x768] sm:$0xf]
    %v324 = vld [vmem:[#allocation5 + $0x76c] sm:$0xff]
    %v325 = vld [vmem:[#allocation5 + $0x774] sm:$0xff]
    %v326 = vld [vmem:[#allocation5 + $0x77c] sm:$0xff]
    %v327 = vld [vmem:[#allocation5 + $0x784] sm:$0xff]
    %v328 = vld [vmem:[#allocation5 + $0x78c] sm:$0xff]
    %v329 = vld [vmem:[#allocation5 + $0x794] sm:$0xff]
    %v330 = vld [vmem:[#allocation5 + $0x79c] sm:$0xff]
    %v331 = vld [vmem:[#allocation5 + $0x7a4] sm:$0xff]
    %v332 = vld [vmem:[#allocation5 + $0x7ac] sm:$0xff]
    %v333 = vld [vmem:[#allocation5 + $0x7b4] sm:$0xff]
    %v334 = vld [vmem:[#allocation5 + $0x7bc] sm:$0xff]
    %v335 = vld [vmem:[#allocation5 + $0x7c4] sm:$0xff]
    %v336 = vld [vmem:[#allocation5 + $0x7cc] sm:$0xf]
    %v337 = vld [vmem:[#allocation5 + $0x7d0] sm:$0xff]
    %v338 = vld [vmem:[#allocation5 + $0x7d8] sm:$0xff]
    %v339 = vld [vmem:[#allocation5 + $0x7e0] sm:$0xff]
    %v340 = vld [vmem:[#allocation5 + $0x7e8] sm:$0xff]
    %v341 = vld [vmem:[#allocation5 + $0x7f0] sm:$0xff]
    %v342 = vld [vmem:[#allocation5 + $0x7f8] sm:$0xff]
    %v343 = vld [vmem:[#allocation5 + $0x800] sm:$0xff]
    %v344 = vld [vmem:[#allocation5 + $0x808] sm:$0xff]
    %v345 = vld [vmem:[#allocation5 + $0x810] sm:$0xff]
    %v346 = vld [vmem:[#allocation5 + $0x818] sm:$0xff]
    %v347 = vld [vmem:[#allocation5 + $0x820] sm:$0xff]
    %v348 = vld [vmem:[#allocation5 + $0x828] sm:$0xff]
    %v349 = vld [vmem:[#allocation5 + $0x830] sm:$0xf]
    %v350 = vld [vmem:[#allocation5 + $0x834] sm:$0xff]
    %v351 = vld [vmem:[#allocation5 + $0x83c] sm:$0xff]
    %v352 = vld [vmem:[#allocation5 + $0x844] sm:$0xff]
    %v353 = vld [vmem:[#allocation5 + $0x84c] sm:$0xff]
    %v354 = vld [vmem:[#allocation5 + $0x854] sm:$0xff]
    %v355 = vld [vmem:[#allocation5 + $0x85c] sm:$0xff]
    %v356 = vld [vmem:[#allocation5 + $0x864] sm:$0xff]
    %v357 = vld [vmem:[#allocation5 + $0x86c] sm:$0xff]
    %v358 = vld [vmem:[#allocation5 + $0x874] sm:$0xff]
    %v359 = vld [vmem:[#allocation5 + $0x87c] sm:$0xff]
    %v360 = vld [vmem:[#allocation5 + $0x884] sm:$0xff]
    %v361 = vld [vmem:[#allocation5 + $0x88c] sm:$0xff]
    %v362 = vld [vmem:[#allocation5 + $0x894] sm:$0xf]
    %v363 = vld [vmem:[#allocation5 + $0x898] sm:$0xff]
    %v364 = vld [vmem:[#allocation5 + $0x8a0] sm:$0xff]
    %v365 = vld [vmem:[#allocation5 + $0x8a8] sm:$0xff]
    %v366 = vld [vmem:[#allocation5 + $0x8b0] sm:$0xff]
    %v367 = vld [vmem:[#allocation5 + $0x8b8] sm:$0xff]
    %v368 = vld [vmem:[#allocation5 + $0x8c0] sm:$0xff]
    %v369 = vld [vmem:[#allocation5 + $0x8c8] sm:$0xff]
    %v370 = vld [vmem:[#allocation5 + $0x8d0] sm:$0xff]
    %v371 = vld [vmem:[#allocation5 + $0x8d8] sm:$0xff]
    %v372 = vld [vmem:[#allocation5 + $0x8e0] sm:$0xff]
    %v373 = vld [vmem:[#allocation5 + $0x8e8] sm:$0xff]
    %v374 = vld [vmem:[#allocation5 + $0x8f0] sm:$0xff]
    %v375 = vld [vmem:[#allocation5 + $0x8f8] sm:$0xf]
    %v376 = vld [vmem:[#allocation5 + $0x8fc] sm:$0xff]
    %v377 = vld [vmem:[#allocation5 + $0x904] sm:$0xff]
    %v378 = vld [vmem:[#allocation5 + $0x90c] sm:$0xff]
    %v379 = vld [vmem:[#allocation5 + $0x914] sm:$0xff]
    %v380 = vld [vmem:[#allocation5 + $0x91c] sm:$0xff]
    %v381 = vld [vmem:[#allocation5 + $0x924] sm:$0xff]
    %v382 = vld [vmem:[#allocation5 + $0x92c] sm:$0xff]
    %v383 = vld [vmem:[#allocation5 + $0x934] sm:$0xff]
    %v384 = vld [vmem:[#allocation5 + $0x93c] sm:$0xff]
    %v385 = vld [vmem:[#allocation5 + $0x944] sm:$0xff]
    %v386 = vld [vmem:[#allocation5 + $0x94c] sm:$0xff]
    %v387 = vld [vmem:[#allocation5 + $0x954] sm:$0xff]
    %v388 = vld [vmem:[#allocation5 + $0x95c] sm:$0xf]
    %v701 = vunpack.c.l.b16 %v77
    %v702 = vunpack.c.h.b16 %v77
    %v703 = vunpack.c.l.b16 %v78
    %v704 = vunpack.c.h.b16 %v78
    %v705 = vunpack.c.l.b16 %v79
    %v706 = vunpack.c.h.b16 %v79
    %v707 = vunpack.c.l.b16 %v80
    %v708 = vunpack.c.h.b16 %v80
    %v709 = vunpack.c.l.b16 %v81
    %v710 = vunpack.c.h.b16 %v81
    %v711 = vunpack.c.l.b16 %v82
    %v712 = vunpack.c.h.b16 %v82
    %v713 = vunpack.c.l.b16 %v83
    %v714 = vunpack.c.h.b16 %v83
    %v715 = vunpack.c.l.b16 %v84
    %v716 = vunpack.c.h.b16 %v84
    %v717 = vunpack.c.l.b16 %v85
    %v718 = vunpack.c.h.b16 %v85
    %v719 = vunpack.c.l.b16 %v86
    %v720 = vunpack.c.h.b16 %v86
    %v721 = vunpack.c.l.b16 %v87
    %v722 = vunpack.c.h.b16 %v87
    %v723 = vunpack.c.l.b16 %v88
    %v724 = vunpack.c.h.b16 %v88
    %v725 = vunpack.c.l.b16 %v89
    %v726 = vunpack.c.l.b16 %v90
    %v727 = vunpack.c.h.b16 %v90
    %v728 = vunpack.c.l.b16 %v91
    %v729 = vunpack.c.h.b16 %v91
    %v730 = vunpack.c.l.b16 %v92
    %v731 = vunpack.c.h.b16 %v92
    %v732 = vunpack.c.l.b16 %v93
    %v733 = vunpack.c.h.b16 %v93
    %v734 = vunpack.c.l.b16 %v94
    %v735 = vunpack.c.h.b16 %v94
    %v736 = vunpack.c.l.b16 %v95
    %v737 = vunpack.c.h.b16 %v95
    %v738 = vunpack.c.l.b16 %v96
    %v739 = vunpack.c.h.b16 %v96
    %v740 = vunpack.c.l.b16 %v97
    %v741 = vunpack.c.h.b16 %v97
    %v742 = vunpack.c.l.b16 %v98
    %v743 = vunpack.c.h.b16 %v98
    %v744 = vunpack.c.l.b16 %v99
    %v745 = vunpack.c.h.b16 %v99
    %v746 = vunpack.c.l.b16 %v100
    %v747 = vunpack.c.h.b16 %v100
    %v748 = vunpack.c.l.b16 %v101
    %v749 = vunpack.c.h.b16 %v101
    %v750 = vunpack.c.l.b16 %v102
    %v751 = vunpack.c.l.b16 %v103
    %v752 = vunpack.c.h.b16 %v103
    %v753 = vunpack.c.l.b16 %v104
    %v754 = vunpack.c.h.b16 %v104
    %v755 = vunpack.c.l.b16 %v105
    %v756 = vunpack.c.h.b16 %v105
    %v757 = vunpack.c.l.b16 %v106
    %v758 = vunpack.c.h.b16 %v106
    %v759 = vunpack.c.l.b16 %v107
    %v760 = vunpack.c.h.b16 %v107
    %v761 = vunpack.c.l.b16 %v108
    %v762 = vunpack.c.h.b16 %v108
    %v763 = vunpack.c.l.b16 %v109
    %v764 = vunpack.c.h.b16 %v109
    %v765 = vunpack.c.l.b16 %v110
    %v766 = vunpack.c.h.b16 %v110
    %v767 = vunpack.c.l.b16 %v111
    %v768 = vunpack.c.h.b16 %v111
    %v769 = vunpack.c.l.b16 %v112
    %v770 = vunpack.c.h.b16 %v112
    %v771 = vunpack.c.l.b16 %v113
    %v772 = vunpack.c.h.b16 %v113
    %v773 = vunpack.c.l.b16 %v114
    %v774 = vunpack.c.h.b16 %v114
    %v775 = vunpack.c.l.b16 %v115
    %v776 = vunpack.c.l.b16 %v116
    %v777 = vunpack.c.h.b16 %v116
    %v778 = vunpack.c.l.b16 %v117
    %v779 = vunpack.c.h.b16 %v117
    %v780 = vunpack.c.l.b16 %v118
    %v781 = vunpack.c.h.b16 %v118
    %v782 = vunpack.c.l.b16 %v119
    %v783 = vunpack.c.h.b16 %v119
    %v784 = vunpack.c.l.b16 %v120
    %v785 = vunpack.c.h.b16 %v120
    %v786 = vunpack.c.l.b16 %v121
    %v787 = vunpack.c.h.b16 %v121
    %v788 = vunpack.c.l.b16 %v122
    %v789 = vunpack.c.h.b16 %v122
    %v790 = vunpack.c.l.b16 %v123
    %v791 = vunpack.c.h.b16 %v123
    %v792 = vunpack.c.l.b16 %v124
    %v793 = vunpack.c.h.b16 %v124
    %v794 = vunpack.c.l.b16 %v125
    %v795 = vunpack.c.h.b16 %v125
    %v796 = vunpack.c.l.b16 %v126
    %v797 = vunpack.c.h.b16 %v126
    %v798 = vunpack.c.l.b16 %v127
    %v799 = vunpack.c.h.b16 %v127
    %v800 = vunpack.c.l.b16 %v128
    %v801 = vunpack.c.l.b16 %v129
    %v802 = vunpack.c.h.b16 %v129
    %v803 = vunpack.c.l.b16 %v130
    %v804 = vunpack.c.h.b16 %v130
    %v805 = vunpack.c.l.b16 %v131
    %v806 = vunpack.c.h.b16 %v131
    %v807 = vunpack.c.l.b16 %v132
    %v808 = vunpack.c.h.b16 %v132
    %v809 = vunpack.c.l.b16 %v133
    %v810 = vunpack.c.h.b16 %v133
    %v811 = vunpack.c.l.b16 %v134
    %v812 = vunpack.c.h.b16 %v134
    %v813 = vunpack.c.l.b16 %v135
    %v814 = vunpack.c.h.b16 %v135
    %v815 = vunpack.c.l.b16 %v136
    %v816 = vunpack.c.h.b16 %v136
    %v817 = vunpack.c.l.b16 %v137
    %v818 = vunpack.c.h.b16 %v137
    %v819 = vunpack.c.l.b16 %v138
    %v820 = vunpack.c.h.b16 %v138
    %v821 = vunpack.c.l.b16 %v139
    %v822 = vunpack.c.h.b16 %v139
    %v823 = vunpack.c.l.b16 %v140
    %v824 = vunpack.c.h.b16 %v140
    %v825 = vunpack.c.l.b16 %v141
    %v826 = vunpack.c.l.b16 %v142
    %v827 = vunpack.c.h.b16 %v142
    %v828 = vunpack.c.l.b16 %v143
    %v829 = vunpack.c.h.b16 %v143
    %v830 = vunpack.c.l.b16 %v144
    %v831 = vunpack.c.h.b16 %v144
    %v832 = vunpack.c.l.b16 %v145
    %v833 = vunpack.c.h.b16 %v145
    %v834 = vunpack.c.l.b16 %v146
    %v835 = vunpack.c.h.b16 %v146
    %v836 = vunpack.c.l.b16 %v147
    %v837 = vunpack.c.h.b16 %v147
    %v838 = vunpack.c.l.b16 %v148
    %v839 = vunpack.c.h.b16 %v148
    %v840 = vunpack.c.l.b16 %v149
    %v841 = vunpack.c.h.b16 %v149
    %v842 = vunpack.c.l.b16 %v150
    %v843 = vunpack.c.h.b16 %v150
    %v844 = vunpack.c.l.b16 %v151
    %v845 = vunpack.c.h.b16 %v151
    %v846 = vunpack.c.l.b16 %v152
    %v847 = vunpack.c.h.b16 %v152
    %v848 = vunpack.c.l.b16 %v153
    %v849 = vunpack.c.h.b16 %v153
    %v850 = vunpack.c.l.b16 %v154
    %v851 = vunpack.c.l.b16 %v155
    %v852 = vunpack.c.h.b16 %v155
    %v853 = vunpack.c.l.b16 %v156
    %v854 = vunpack.c.h.b16 %v156
    %v855 = vunpack.c.l.b16 %v157
    %v856 = vunpack.c.h.b16 %v157
    %v857 = vunpack.c.l.b16 %v158
    %v858 = vunpack.c.h.b16 %v158
    %v859 = vunpack.c.l.b16 %v159
    %v860 = vunpack.c.h.b16 %v159
    %v861 = vunpack.c.l.b16 %v160
    %v862 = vunpack.c.h.b16 %v160
    %v863 = vunpack.c.l.b16 %v161
    %v864 = vunpack.c.h.b16 %v161
    %v865 = vunpack.c.l.b16 %v162
    %v866 = vunpack.c.h.b16 %v162
    %v867 = vunpack.c.l.b16 %v163
    %v868 = vunpack.c.h.b16 %v163
    %v869 = vunpack.c.l.b16 %v164
    %v870 = vunpack.c.h.b16 %v164
    %v871 = vunpack.c.l.b16 %v165
    %v872 = vunpack.c.h.b16 %v165
    %v873 = vunpack.c.l.b16 %v166
    %v874 = vunpack.c.h.b16 %v166
    %v875 = vunpack.c.l.b16 %v167
    %v876 = vunpack.c.l.b16 %v168
    %v877 = vunpack.c.h.b16 %v168
    %v878 = vunpack.c.l.b16 %v169
    %v879 = vunpack.c.h.b16 %v169
    %v880 = vunpack.c.l.b16 %v170
    %v881 = vunpack.c.h.b16 %v170
    %v882 = vunpack.c.l.b16 %v171
    %v883 = vunpack.c.h.b16 %v171
    %v884 = vunpack.c.l.b16 %v172
    %v885 = vunpack.c.h.b16 %v172
    %v886 = vunpack.c.l.b16 %v173
    %v887 = vunpack.c.h.b16 %v173
    %v888 = vunpack.c.l.b16 %v174
    %v889 = vunpack.c.h.b16 %v174
    %v890 = vunpack.c.l.b16 %v175
    %v891 = vunpack.c.h.b16 %v175
    %v892 = vunpack.c.l.b16 %v176
    %v893 = vunpack.c.h.b16 %v176
    %v894 = vunpack.c.l.b16 %v177
    %v895 = vunpack.c.h.b16 %v177
    %v896 = vunpack.c.l.b16 %v178
    %v897 = vunpack.c.h.b16 %v178
    %v898 = vunpack.c.l.b16 %v179
    %v899 = vunpack.c.h.b16 %v179
    %v900 = vunpack.c.l.b16 %v180
    %v901 = vunpack.c.l.b16 %v181
    %v902 = vunpack.c.h.b16 %v181
    %v903 = vunpack.c.l.b16 %v182
    %v904 = vunpack.c.h.b16 %v182
    %v905 = vunpack.c.l.b16 %v183
    %v906 = vunpack.c.h.b16 %v183
    %v907 = vunpack.c.l.b16 %v184
    %v908 = vunpack.c.h.b16 %v184
    %v909 = vunpack.c.l.b16 %v185
    %v910 = vunpack.c.h.b16 %v185
    %v911 = vunpack.c.l.b16 %v186
    %v912 = vunpack.c.h.b16 %v186
    %v913 = vunpack.c.l.b16 %v187
    %v914 = vunpack.c.h.b16 %v187
    %v915 = vunpack.c.l.b16 %v188
    %v916 = vunpack.c.h.b16 %v188
    %v917 = vunpack.c.l.b16 %v189
    %v918 = vunpack.c.h.b16 %v189
    %v919 = vunpack.c.l.b16 %v190
    %v920 = vunpack.c.h.b16 %v190
    %v921 = vunpack.c.l.b16 %v191
    %v922 = vunpack.c.h.b16 %v191
    %v923 = vunpack.c.l.b16 %v192
    %v924 = vunpack.c.h.b16 %v192
    %v925 = vunpack.c.l.b16 %v193
    %v926 = vunpack.c.l.b16 %v194
    %v927 = vunpack.c.h.b16 %v194
    %v928 = vunpack.c.l.b16 %v195
    %v929 = vunpack.c.h.b16 %v195
    %v930 = vunpack.c.l.b16 %v196
    %v931 = vunpack.c.h.b16 %v196
    %v932 = vunpack.c.l.b16 %v197
    %v933 = vunpack.c.h.b16 %v197
    %v934 = vunpack.c.l.b16 %v198
    %v935 = vunpack.c.h.b16 %v198
    %v936 = vunpack.c.l.b16 %v199
    %v937 = vunpack.c.h.b16 %v199
    %v938 = vunpack.c.l.b16 %v200
    %v939 = vunpack.c.h.b16 %v200
    %v940 = vunpack.c.l.b16 %v201
    %v941 = vunpack.c.h.b16 %v201
    %v942 = vunpack.c.l.b16 %v202
    %v943 = vunpack.c.h.b16 %v202
    %v944 = vunpack.c.l.b16 %v203
    %v945 = vunpack.c.h.b16 %v203
    %v946 = vunpack.c.l.b16 %v204
    %v947 = vunpack.c.h.b16 %v204
    %v948 = vunpack.c.l.b16 %v205
    %v949 = vunpack.c.h.b16 %v205
    %v950 = vunpack.c.l.b16 %v206
    %v951 = vunpack.c.l.b16 %v207
    %v952 = vunpack.c.h.b16 %v207
    %v953 = vunpack.c.l.b16 %v208
    %v954 = vunpack.c.h.b16 %v208
    %v955 = vunpack.c.l.b16 %v209
    %v956 = vunpack.c.h.b16 %v209
    %v957 = vunpack.c.l.b16 %v210
    %v958 = vunpack.c.h.b16 %v210
    %v959 = vunpack.c.l.b16 %v211
    %v960 = vunpack.c.h.b16 %v211
    %v961 = vunpack.c.l.b16 %v212
    %v962 = vunpack.c.h.b16 %v212
    %v963 = vunpack.c.l.b16 %v213
    %v964 = vunpack.c.h.b16 %v213
    %v965 = vunpack.c.l.b16 %v214
    %v966 = vunpack.c.h.b16 %v214
    %v967 = vunpack.c.l.b16 %v215
    %v968 = vunpack.c.h.b16 %v215
    %v969 = vunpack.c.l.b16 %v216
    %v970 = vunpack.c.h.b16 %v216
    %v971 = vunpack.c.l.b16 %v217
    %v972 = vunpack.c.h.b16 %v217
    %v973 = vunpack.c.l.b16 %v218
    %v974 = vunpack.c.h.b16 %v218
    %v975 = vunpack.c.l.b16 %v219
    %v976 = vunpack.c.l.b16 %v220
    %v977 = vunpack.c.h.b16 %v220
    %v978 = vunpack.c.l.b16 %v221
    %v979 = vunpack.c.h.b16 %v221
    %v980 = vunpack.c.l.b16 %v222
    %v981 = vunpack.c.h.b16 %v222
    %v982 = vunpack.c.l.b16 %v223
    %v983 = vunpack.c.h.b16 %v223
    %v984 = vunpack.c.l.b16 %v224
    %v985 = vunpack.c.h.b16 %v224
    %v986 = vunpack.c.l.b16 %v225
    %v987 = vunpack.c.h.b16 %v225
    %v988 = vunpack.c.l.b16 %v226
    %v989 = vunpack.c.h.b16 %v226
    %v990 = vunpack.c.l.b16 %v227
    %v991 = vunpack.c.h.b16 %v227
    %v992 = vunpack.c.l.b16 %v228
    %v993 = vunpack.c.h.b16 %v228
    %v994 = vunpack.c.l.b16 %v229
    %v995 = vunpack.c.h.b16 %v229
    %v996 = vunpack.c.l.b16 %v230
    %v997 = vunpack.c.h.b16 %v230
    %v998 = vunpack.c.l.b16 %v231
    %v999 = vunpack.c.h.b16 %v231
    %v1000 = vunpack.c.l.b16 %v232
    %v1001 = vunpack.c.l.b16 %v233
    %v1002 = vunpack.c.h.b16 %v233
    %v1003 = vunpack.c.l.b16 %v234
    %v1004 = vunpack.c.h.b16 %v234
    %v1005 = vunpack.c.l.b16 %v235
    %v1006 = vunpack.c.h.b16 %v235
    %v1007 = vunpack.c.l.b16 %v236
    %v1008 = vunpack.c.h.b16 %v236
    %v1009 = vunpack.c.l.b16 %v237
    %v1010 = vunpack.c.h.b16 %v237
    %v1011 = vunpack.c.l.b16 %v238
    %v1012 = vunpack.c.h.b16 %v238
    %v1013 = vunpack.c.l.b16 %v239
    %v1014 = vunpack.c.h.b16 %v239
    %v1015 = vunpack.c.l.b16 %v240
    %v1016 = vunpack.c.h.b16 %v240
    %v1017 = vunpack.c.l.b16 %v241
    %v1018 = vunpack.c.h.b16 %v241
    %v1019 = vunpack.c.l.b16 %v242
    %v1020 = vunpack.c.h.b16 %v242
    %v1021 = vunpack.c.l.b16 %v243
    %v1022 = vunpack.c.h.b16 %v243
    %v1023 = vunpack.c.l.b16 %v244
    %v1024 = vunpack.c.h.b16 %v244
    %v1025 = vunpack.c.l.b16 %v245
    %v1026 = vunpack.c.l.b16 %v246
    %v1027 = vunpack.c.h.b16 %v246
    %v1028 = vunpack.c.l.b16 %v247
    %v1029 = vunpack.c.h.b16 %v247
    %v1030 = vunpack.c.l.b16 %v248
    %v1031 = vunpack.c.h.b16 %v248
    %v1032 = vunpack.c.l.b16 %v249
    %v1033 = vunpack.c.h.b16 %v249
    %v1034 = vunpack.c.l.b16 %v250
    %v1035 = vunpack.c.h.b16 %v250
    %v1036 = vunpack.c.l.b16 %v251
    %v1037 = vunpack.c.h.b16 %v251
    %v1038 = vunpack.c.l.b16 %v252
    %v1039 = vunpack.c.h.b16 %v252
    %v1040 = vunpack.c.l.b16 %v253
    %v1041 = vunpack.c.h.b16 %v253
    %v1042 = vunpack.c.l.b16 %v254
    %v1043 = vunpack.c.h.b16 %v254
    %v1044 = vunpack.c.l.b16 %v255
    %v1045 = vunpack.c.h.b16 %v255
    %v1046 = vunpack.c.l.b16 %v256
    %v1047 = vunpack.c.h.b16 %v256
    %v1048 = vunpack.c.l.b16 %v257
    %v1049 = vunpack.c.h.b16 %v257
    %v1050 = vunpack.c.l.b16 %v258
    %v1051 = vunpack.c.l.b16 %v259
    %v1052 = vunpack.c.h.b16 %v259
    %v1053 = vunpack.c.l.b16 %v260
    %v1054 = vunpack.c.h.b16 %v260
    %v1055 = vunpack.c.l.b16 %v261
    %v1056 = vunpack.c.h.b16 %v261
    %v1057 = vunpack.c.l.b16 %v262
    %v1058 = vunpack.c.h.b16 %v262
    %v1059 = vunpack.c.l.b16 %v263
    %v1060 = vunpack.c.h.b16 %v263
    %v1061 = vunpack.c.l.b16 %v264
    %v1062 = vunpack.c.h.b16 %v264
    %v1063 = vunpack.c.l.b16 %v265
    %v1064 = vunpack.c.h.b16 %v265
    %v1065 = vunpack.c.l.b16 %v266
    %v1066 = vunpack.c.h.b16 %v266
    %v1067 = vunpack.c.l.b16 %v267
    %v1068 = vunpack.c.h.b16 %v267
    %v1069 = vunpack.c.l.b16 %v268
    %v1070 = vunpack.c.h.b16 %v268
    %v1071 = vunpack.c.l.b16 %v269
    %v1072 = vunpack.c.h.b16 %v269
    %v1073 = vunpack.c.l.b16 %v270
    %v1074 = vunpack.c.h.b16 %v270
    %v1075 = vunpack.c.l.b16 %v271
    %v1076 = vunpack.c.l.b16 %v272
    %v1077 = vunpack.c.h.b16 %v272
    %v1078 = vunpack.c.l.b16 %v273
    %v1079 = vunpack.c.h.b16 %v273
    %v1080 = vunpack.c.l.b16 %v274
    %v1081 = vunpack.c.h.b16 %v274
    %v1082 = vunpack.c.l.b16 %v275
    %v1083 = vunpack.c.h.b16 %v275
    %v1084 = vunpack.c.l.b16 %v276
    %v1085 = vunpack.c.h.b16 %v276
    %v1086 = vunpack.c.l.b16 %v277
    %v1087 = vunpack.c.h.b16 %v277
    %v1088 = vunpack.c.l.b16 %v278
    %v1089 = vunpack.c.h.b16 %v278
    %v1090 = vunpack.c.l.b16 %v279
    %v1091 = vunpack.c.h.b16 %v279
    %v1092 = vunpack.c.l.b16 %v280
    %v1093 = vunpack.c.h.b16 %v280
    %v1094 = vunpack.c.l.b16 %v281
    %v1095 = vunpack.c.h.b16 %v281
    %v1096 = vunpack.c.l.b16 %v282
    %v1097 = vunpack.c.h.b16 %v282
    %v1098 = vunpack.c.l.b16 %v283
    %v1099 = vunpack.c.h.b16 %v283
    %v1100 = vunpack.c.l.b16 %v284
    %v1101 = vunpack.c.l.b16 %v285
    %v1102 = vunpack.c.h.b16 %v285
    %v1103 = vunpack.c.l.b16 %v286
    %v1104 = vunpack.c.h.b16 %v286
    %v1105 = vunpack.c.l.b16 %v287
    %v1106 = vunpack.c.h.b16 %v287
    %v1107 = vunpack.c.l.b16 %v288
    %v1108 = vunpack.c.h.b16 %v288
    %v1109 = vunpack.c.l.b16 %v289
    %v1110 = vunpack.c.h.b16 %v289
    %v1111 = vunpack.c.l.b16 %v290
    %v1112 = vunpack.c.h.b16 %v290
    %v1113 = vunpack.c.l.b16 %v291
    %v1114 = vunpack.c.h.b16 %v291
    %v1115 = vunpack.c.l.b16 %v292
    %v1116 = vunpack.c.h.b16 %v292
    %v1117 = vunpack.c.l.b16 %v293
    %v1118 = vunpack.c.h.b16 %v293
    %v1119 = vunpack.c.l.b16 %v294
    %v1120 = vunpack.c.h.b16 %v294
    %v1121 = vunpack.c.l.b16 %v295
    %v1122 = vunpack.c.h.b16 %v295
    %v1123 = vunpack.c.l.b16 %v296
    %v1124 = vunpack.c.h.b16 %v296
    %v1125 = vunpack.c.l.b16 %v297
    %v1126 = vunpack.c.l.b16 %v298
    %v1127 = vunpack.c.h.b16 %v298
    %v1128 = vunpack.c.l.b16 %v299
    %v1129 = vunpack.c.h.b16 %v299
    %v1130 = vunpack.c.l.b16 %v300
    %v1131 = vunpack.c.h.b16 %v300
    %v1132 = vunpack.c.l.b16 %v301
    %v1133 = vunpack.c.h.b16 %v301
    %v1134 = vunpack.c.l.b16 %v302
    %v1135 = vunpack.c.h.b16 %v302
    %v1136 = vunpack.c.l.b16 %v303
    %v1137 = vunpack.c.h.b16 %v303
    %v1138 = vunpack.c.l.b16 %v304
    %v1139 = vunpack.c.h.b16 %v304
    %v1140 = vunpack.c.l.b16 %v305
    %v1141 = vunpack.c.h.b16 %v305
    %v1142 = vunpack.c.l.b16 %v306
    %v1143 = vunpack.c.h.b16 %v306
    %v1144 = vunpack.c.l.b16 %v307
    %v1145 = vunpack.c.h.b16 %v307
    %v1146 = vunpack.c.l.b16 %v308
    %v1147 = vunpack.c.h.b16 %v308
    %v1148 = vunpack.c.l.b16 %v309
    %v1149 = vunpack.c.h.b16 %v309
    %v1150 = vunpack.c.l.b16 %v310
    %v1151 = vunpack.c.l.b16 %v311
    %v1152 = vunpack.c.h.b16 %v311
    %v1153 = vunpack.c.l.b16 %v312
    %v1154 = vunpack.c.h.b16 %v312
    %v1155 = vunpack.c.l.b16 %v313
    %v1156 = vunpack.c.h.b16 %v313
    %v1157 = vunpack.c.l.b16 %v314
    %v1158 = vunpack.c.h.b16 %v314
    %v1159 = vunpack.c.l.b16 %v315
    %v1160 = vunpack.c.h.b16 %v315
    %v1161 = vunpack.c.l.b16 %v316
    %v1162 = vunpack.c.h.b16 %v316
    %v1163 = vunpack.c.l.b16 %v317
    %v1164 = vunpack.c.h.b16 %v317
    %v1165 = vunpack.c.l.b16 %v318
    %v1166 = vunpack.c.h.b16 %v318
    %v1167 = vunpack.c.l.b16 %v319
    %v1168 = vunpack.c.h.b16 %v319
    %v1169 = vunpack.c.l.b16 %v320
    %v1170 = vunpack.c.h.b16 %v320
    %v1171 = vunpack.c.l.b16 %v321
    %v1172 = vunpack.c.h.b16 %v321
    %v1173 = vunpack.c.l.b16 %v322
    %v1174 = vunpack.c.h.b16 %v322
    %v1175 = vunpack.c.l.b16 %v323
    %v1176 = vunpack.c.l.b16 %v324
    %v1177 = vunpack.c.h.b16 %v324
    %v1178 = vunpack.c.l.b16 %v325
    %v1179 = vunpack.c.h.b16 %v325
    %v1180 = vunpack.c.l.b16 %v326
    %v1181 = vunpack.c.h.b16 %v326
    %v1182 = vunpack.c.l.b16 %v327
    %v1183 = vunpack.c.h.b16 %v327
    %v1184 = vunpack.c.l.b16 %v328
    %v1185 = vunpack.c.h.b16 %v328
    %v1186 = vunpack.c.l.b16 %v329
    %v1187 = vunpack.c.h.b16 %v329
    %v1188 = vunpack.c.l.b16 %v330
    %v1189 = vunpack.c.h.b16 %v330
    %v1190 = vunpack.c.l.b16 %v331
    %v1191 = vunpack.c.h.b16 %v331
    %v1192 = vunpack.c.l.b16 %v332
    %v1193 = vunpack.c.h.b16 %v332
    %v1194 = vunpack.c.l.b16 %v333
    %v1195 = vunpack.c.h.b16 %v333
    %v1196 = vunpack.c.l.b16 %v334
    %v1197 = vunpack.c.h.b16 %v334
    %v1198 = vunpack.c.l.b16 %v335
    %v1199 = vunpack.c.h.b16 %v335
    %v1200 = vunpack.c.l.b16 %v336
    %v1201 = vunpack.c.l.b16 %v337
    %v1202 = vunpack.c.h.b16 %v337
    %v1203 = vunpack.c.l.b16 %v338
    %v1204 = vunpack.c.h.b16 %v338
    %v1205 = vunpack.c.l.b16 %v339
    %v1206 = vunpack.c.h.b16 %v339
    %v1207 = vunpack.c.l.b16 %v340
    %v1208 = vunpack.c.h.b16 %v340
    %v1209 = vunpack.c.l.b16 %v341
    %v1210 = vunpack.c.h.b16 %v341
    %v1211 = vunpack.c.l.b16 %v342
    %v1212 = vunpack.c.h.b16 %v342
    %v1213 = vunpack.c.l.b16 %v343
    %v1214 = vunpack.c.h.b16 %v343
    %v1215 = vunpack.c.l.b16 %v344
    %v1216 = vunpack.c.h.b16 %v344
    %v1217 = vunpack.c.l.b16 %v345
    %v1218 = vunpack.c.h.b16 %v345
    %v1219 = vunpack.c.l.b16 %v346
    %v1220 = vunpack.c.h.b16 %v346
    %v1221 = vunpack.c.l.b16 %v347
    %v1222 = vunpack.c.h.b16 %v347
    %v1223 = vunpack.c.l.b16 %v348
    %v1224 = vunpack.c.h.b16 %v348
    %v1225 = vunpack.c.l.b16 %v349
    %v1226 = vunpack.c.l.b16 %v350
    %v1227 = vunpack.c.h.b16 %v350
    %v1228 = vunpack.c.l.b16 %v351
    %v1229 = vunpack.c.h.b16 %v351
    %v1230 = vunpack.c.l.b16 %v352
    %v1231 = vunpack.c.h.b16 %v352
    %v1232 = vunpack.c.l.b16 %v353
    %v1233 = vunpack.c.h.b16 %v353
    %v1234 = vunpack.c.l.b16 %v354
    %v1235 = vunpack.c.h.b16 %v354
    %v1236 = vunpack.c.l.b16 %v355
    %v1237 = vunpack.c.h.b16 %v355
    %v1238 = vunpack.c.l.b16 %v356
    %v1239 = vunpack.c.h.b16 %v356
    %v1240 = vunpack.c.l.b16 %v357
    %v1241 = vunpack.c.h.b16 %v357
    %v1242 = vunpack.c.l.b16 %v358
    %v1243 = vunpack.c.h.b16 %v358
    %v1244 = vunpack.c.l.b16 %v359
    %v1245 = vunpack.c.h.b16 %v359
    %v1246 = vunpack.c.l.b16 %v360
    %v1247 = vunpack.c.h.b16 %v360
    %v1248 = vunpack.c.l.b16 %v361
    %v1249 = vunpack.c.h.b16 %v361
    %v1250 = vunpack.c.l.b16 %v362
    %v1251 = vunpack.c.l.b16 %v363
    %v1252 = vunpack.c.h.b16 %v363
    %v1253 = vunpack.c.l.b16 %v364
    %v1254 = vunpack.c.h.b16 %v364
    %v1255 = vunpack.c.l.b16 %v365
    %v1256 = vunpack.c.h.b16 %v365
    %v1257 = vunpack.c.l.b16 %v366
    %v1258 = vunpack.c.h.b16 %v366
    %v1259 = vunpack.c.l.b16 %v367
    %v1260 = vunpack.c.h.b16 %v367
    %v1261 = vunpack.c.l.b16 %v368
    %v1262 = vunpack.c.h.b16 %v368
    %v1263 = vunpack.c.l.b16 %v369
    %v1264 = vunpack.c.h.b16 %v369
    %v1265 = vunpack.c.l.b16 %v370
    %v1266 = vunpack.c.h.b16 %v370
    %v1267 = vunpack.c.l.b16 %v371
    %v1268 = vunpack.c.h.b16 %v371
    %v1269 = vunpack.c.l.b16 %v372
    %v1270 = vunpack.c.h.b16 %v372
    %v1271 = vunpack.c.l.b16 %v373
    %v1272 = vunpack.c.h.b16 %v373
    %v1273 = vunpack.c.l.b16 %v374
    %v1274 = vunpack.c.h.b16 %v374
    %v1275 = vunpack.c.l.b16 %v375
    %v1276 = vunpack.c.l.b16 %v376
    %v1277 = vunpack.c.h.b16 %v376
    %v1278 = vunpack.c.l.b16 %v377
    %v1279 = vunpack.c.h.b16 %v377
    %v1280 = vunpack.c.l.b16 %v378
    %v1281 = vunpack.c.h.b16 %v378
    %v1282 = vunpack.c.l.b16 %v379
    %v1283 = vunpack.c.h.b16 %v379
    %v1284 = vunpack.c.l.b16 %v380
    %v1285 = vunpack.c.h.b16 %v380
    %v1286 = vunpack.c.l.b16 %v381
    %v1287 = vunpack.c.h.b16 %v381
    %v1288 = vunpack.c.l.b16 %v382
    %v1289 = vunpack.c.h.b16 %v382
    %v1290 = vunpack.c.l.b16 %v383
    %v1291 = vunpack.c.h.b16 %v383
    %v1292 = vunpack.c.l.b16 %v384
    %v1293 = vunpack.c.h.b16 %v384
    %v1294 = vunpack.c.l.b16 %v385
    %v1295 = vunpack.c.h.b16 %v385
    %v1296 = vunpack.c.l.b16 %v386
    %v1297 = vunpack.c.h.b16 %v386
    %v1298 = vunpack.c.l.b16 %v387
    %v1299 = vunpack.c.h.b16 %v387
    %v1300 = vunpack.c.l.b16 %v388
    %v1301 = vpack.c.b16 %v726, %v701
    %v1302 = vpack.c.b16 %v727, %v702
    %v1303 = vpack.c.b16 %v728, %v703
    %v1304 = vpack.c.b16 %v729, %v704
    %v1305 = vpack.c.b16 %v730, %v705
    %v1306 = vpack.c.b16 %v731, %v706
    %v1307 = vpack.c.b16 %v732, %v707
    %v1308 = vpack.c.b16 %v733, %v708
    %v1309 = vpack.c.b16 %v734, %v709
    %v1310 = vpack.c.b16 %v735, %v710
    %v1311 = vpack.c.b16 %v736, %v711
    %v1312 = vpack.c.b16 %v737, %v712
    %v1313 = vpack.c.b16 %v738, %v713
    %v1314 = vpack.c.b16 %v739, %v714
    %v1315 = vpack.c.b16 %v740, %v715
    %v1316 = vpack.c.b16 %v741, %v716
    %v1317 = vpack.c.b16 %v742, %v717
    %v1318 = vpack.c.b16 %v743, %v718
    %v1319 = vpack.c.b16 %v744, %v719
    %v1320 = vpack.c.b16 %v745, %v720
    %v1321 = vpack.c.b16 %v746, %v721
    %v1322 = vpack.c.b16 %v747, %v722
    %v1323 = vpack.c.b16 %v748, %v723
    %v1324 = vpack.c.b16 %v749, %v724
    %v1325 = vpack.c.b16 %v750, %v725
    %v1326 = vpack.c.b16 %v776, %v751
    %v1327 = vpack.c.b16 %v777, %v752
    %v1328 = vpack.c.b16 %v778, %v753
    %v1329 = vpack.c.b16 %v779, %v754
    %v1330 = vpack.c.b16 %v780, %v755
    %v1331 = vpack.c.b16 %v781, %v756
    %v1332 = vpack.c.b16 %v782, %v757
    %v1333 = vpack.c.b16 %v783, %v758
    %v1334 = vpack.c.b16 %v784, %v759
    %v1335 = vpack.c.b16 %v785, %v760
    %v1336 = vpack.c.b16 %v786, %v761
    %v1337 = vpack.c.b16 %v787, %v762
    %v1338 = vpack.c.b16 %v788, %v763
    %v1339 = vpack.c.b16 %v789, %v764
    %v1340 = vpack.c.b16 %v790, %v765
    %v1341 = vpack.c.b16 %v791, %v766
    %v1342 = vpack.c.b16 %v792, %v767
    %v1343 = vpack.c.b16 %v793, %v768
    %v1344 = vpack.c.b16 %v794, %v769
    %v1345 = vpack.c.b16 %v795, %v770
    %v1346 = vpack.c.b16 %v796, %v771
    %v1347 = vpack.c.b16 %v797, %v772
    %v1348 = vpack.c.b16 %v798, %v773
    %v1349 = vpack.c.b16 %v799, %v774
    %v1350 = vpack.c.b16 %v800, %v775
    %v1351 = vpack.c.b16 %v826, %v801
    %v1352 = vpack.c.b16 %v827, %v802
    %v1353 = vpack.c.b16 %v828, %v803
    %v1354 = vpack.c.b16 %v829, %v804
    %v1355 = vpack.c.b16 %v830, %v805
    %v1356 = vpack.c.b16 %v831, %v806
    %v1357 = vpack.c.b16 %v832, %v807
    %v1358 = vpack.c.b16 %v833, %v808
    %v1359 = vpack.c.b16 %v834, %v809
    %v1360 = vpack.c.b16 %v835, %v810
    %v1361 = vpack.c.b16 %v836, %v811
    %v1362 = vpack.c.b16 %v837, %v812
    %v1363 = vpack.c.b16 %v838, %v813
    %v1364 = vpack.c.b16 %v839, %v814
    %v1365 = vpack.c.b16 %v840, %v815
    %v1366 = vpack.c.b16 %v841, %v816
    %v1367 = vpack.c.b16 %v842, %v817
    %v1368 = vpack.c.b16 %v843, %v818
    %v1369 = vpack.c.b16 %v844, %v819
    %v1370 = vpack.c.b16 %v845, %v820
    %v1371 = vpack.c.b16 %v846, %v821
    %v1372 = vpack.c.b16 %v847, %v822
    %v1373 = vpack.c.b16 %v848, %v823
    %v1374 = vpack.c.b16 %v849, %v824
    %v1375 = vpack.c.b16 %v850, %v825
    %v1376 = vpack.c.b16 %v876, %v851
    %v1377 = vpack.c.b16 %v877, %v852
    %v1378 = vpack.c.b16 %v878, %v853
    %v1379 = vpack.c.b16 %v879, %v854
    %v1380 = vpack.c.b16 %v880, %v855
    %v1381 = vpack.c.b16 %v881, %v856
    %v1382 = vpack.c.b16 %v882, %v857
    %v1383 = vpack.c.b16 %v883, %v858
    %v1384 = vpack.c.b16 %v884, %v859
    %v1385 = vpack.c.b16 %v885, %v860
    %v1386 = vpack.c.b16 %v886, %v861
    %v1387 = vpack.c.b16 %v887, %v862
    %v1388 = vpack.c.b16 %v888, %v863
    %v1389 = vpack.c.b16 %v889, %v864
    %v1390 = vpack.c.b16 %v890, %v865
    %v1391 = vpack.c.b16 %v891, %v866
    %v1392 = vpack.c.b16 %v892, %v867
    %v1393 = vpack.c.b16 %v893, %v868
    %v1394 = vpack.c.b16 %v894, %v869
    %v1395 = vpack.c.b16 %v895, %v870
    %v1396 = vpack.c.b16 %v896, %v871
    %v1397 = vpack.c.b16 %v897, %v872
    %v1398 = vpack.c.b16 %v898, %v873
    %v1399 = vpack.c.b16 %v899, %v874
    %v1400 = vpack.c.b16 %v900, %v875
    %v1401 = vpack.c.b16 %v926, %v901
    %v1402 = vpack.c.b16 %v927, %v902
    %v1403 = vpack.c.b16 %v928, %v903
    %v1404 = vpack.c.b16 %v929, %v904
    %v1405 = vpack.c.b16 %v930, %v905
    %v1406 = vpack.c.b16 %v931, %v906
    %v1407 = vpack.c.b16 %v932, %v907
    %v1408 = vpack.c.b16 %v933, %v908
    %v1409 = vpack.c.b16 %v934, %v909
    %v1410 = vpack.c.b16 %v935, %v910
    %v1411 = vpack.c.b16 %v936, %v911
    %v1412 = vpack.c.b16 %v937, %v912
    %v1413 = vpack.c.b16 %v938, %v913
    %v1414 = vpack.c.b16 %v939, %v914
    %v1415 = vpack.c.b16 %v940, %v915
    %v1416 = vpack.c.b16 %v941, %v916
    %v1417 = vpack.c.b16 %v942, %v917
    %v1418 = vpack.c.b16 %v943, %v918
    %v1419 = vpack.c.b16 %v944, %v919
    %v1420 = vpack.c.b16 %v945, %v920
    %v1421 = vpack.c.b16 %v946, %v921
    %v1422 = vpack.c.b16 %v947, %v922
    %v1423 = vpack.c.b16 %v948, %v923
    %v1424 = vpack.c.b16 %v949, %v924
    %v1425 = vpack.c.b16 %v950, %v925
    %v1426 = vpack.c.b16 %v976, %v951
    %v1427 = vpack.c.b16 %v977, %v952
    %v1428 = vpack.c.b16 %v978, %v953
    %v1429 = vpack.c.b16 %v979, %v954
    %v1430 = vpack.c.b16 %v980, %v955
    %v1431 = vpack.c.b16 %v981, %v956
    %v1432 = vpack.c.b16 %v982, %v957
    %v1433 = vpack.c.b16 %v983, %v958
    %v1434 = vpack.c.b16 %v984, %v959
    %v1435 = vpack.c.b16 %v985, %v960
    %v1436 = vpack.c.b16 %v986, %v961
    %v1437 = vpack.c.b16 %v987, %v962
    %v1438 = vpack.c.b16 %v988, %v963
    %v1439 = vpack.c.b16 %v989, %v964
    %v1440 = vpack.c.b16 %v990, %v965
    %v1441 = vpack.c.b16 %v991, %v966
    %v1442 = vpack.c.b16 %v992, %v967
    %v1443 = vpack.c.b16 %v993, %v968
    %v1444 = vpack.c.b16 %v994, %v969
    %v1445 = vpack.c.b16 %v995, %v970
    %v1446 = vpack.c.b16 %v996, %v971
    %v1447 = vpack.c.b16 %v997, %v972
    %v1448 = vpack.c.b16 %v998, %v973
    %v1449 = vpack.c.b16 %v999, %v974
    %v1450 = vpack.c.b16 %v1000, %v975
    %v1451 = vpack.c.b16 %v1026, %v1001
    %v1452 = vpack.c.b16 %v1027, %v1002
    %v1453 = vpack.c.b16 %v1028, %v1003
    %v1454 = vpack.c.b16 %v1029, %v1004
    %v1455 = vpack.c.b16 %v1030, %v1005
    %v1456 = vpack.c.b16 %v1031, %v1006
    %v1457 = vpack.c.b16 %v1032, %v1007
    %v1458 = vpack.c.b16 %v1033, %v1008
    %v1459 = vpack.c.b16 %v1034, %v1009
    %v1460 = vpack.c.b16 %v1035, %v1010
    %v1461 = vpack.c.b16 %v1036, %v1011
    %v1462 = vpack.c.b16 %v1037, %v1012
    %v1463 = vpack.c.b16 %v1038, %v1013
    %v1464 = vpack.c.b16 %v1039, %v1014
    %v1465 = vpack.c.b16 %v1040, %v1015
    %v1466 = vpack.c.b16 %v1041, %v1016
    %v1467 = vpack.c.b16 %v1042, %v1017
    %v1468 = vpack.c.b16 %v1043, %v1018
    %v1469 = vpack.c.b16 %v1044, %v1019
    %v1470 = vpack.c.b16 %v1045, %v1020
    %v1471 = vpack.c.b16 %v1046, %v1021
    %v1472 = vpack.c.b16 %v1047, %v1022
    %v1473 = vpack.c.b16 %v1048, %v1023
    %v1474 = vpack.c.b16 %v1049, %v1024
    %v1475 = vpack.c.b16 %v1050, %v1025
    %v1476 = vpack.c.b16 %v1076, %v1051
    %v1477 = vpack.c.b16 %v1077, %v1052
    %v1478 = vpack.c.b16 %v1078, %v1053
    %v1479 = vpack.c.b16 %v1079, %v1054
    %v1480 = vpack.c.b16 %v1080, %v1055
    %v1481 = vpack.c.b16 %v1081, %v1056
    %v1482 = vpack.c.b16 %v1082, %v1057
    %v1483 = vpack.c.b16 %v1083, %v1058
    %v1484 = vpack.c.b16 %v1084, %v1059
    %v1485 = vpack.c.b16 %v1085, %v1060
    %v1486 = vpack.c.b16 %v1086, %v1061
    %v1487 = vpack.c.b16 %v1087, %v1062
    %v1488 = vpack.c.b16 %v1088, %v1063
    %v1489 = vpack.c.b16 %v1089, %v1064
    %v1490 = vpack.c.b16 %v1090, %v1065
    %v1491 = vpack.c.b16 %v1091, %v1066
    %v1492 = vpack.c.b16 %v1092, %v1067
    %v1493 = vpack.c.b16 %v1093, %v1068
    %v1494 = vpack.c.b16 %v1094, %v1069
    %v1495 = vpack.c.b16 %v1095, %v1070
    %v1496 = vpack.c.b16 %v1096, %v1071
    %v1497 = vpack.c.b16 %v1097, %v1072
    %v1498 = vpack.c.b16 %v1098, %v1073
    %v1499 = vpack.c.b16 %v1099, %v1074
    %v1500 = vpack.c.b16 %v1100, %v1075
    %v1501 = vpack.c.b16 %v1126, %v1101
    %v1502 = vpack.c.b16 %v1127, %v1102
    %v1503 = vpack.c.b16 %v1128, %v1103
    %v1504 = vpack.c.b16 %v1129, %v1104
    %v1505 = vpack.c.b16 %v1130, %v1105
    %v1506 = vpack.c.b16 %v1131, %v1106
    %v1507 = vpack.c.b16 %v1132, %v1107
    %v1508 = vpack.c.b16 %v1133, %v1108
    %v1509 = vpack.c.b16 %v1134, %v1109
    %v1510 = vpack.c.b16 %v1135, %v1110
    %v1511 = vpack.c.b16 %v1136, %v1111
    %v1512 = vpack.c.b16 %v1137, %v1112
    %v1513 = vpack.c.b16 %v1138, %v1113
    %v1514 = vpack.c.b16 %v1139, %v1114
    %v1515 = vpack.c.b16 %v1140, %v1115
    %v1516 = vpack.c.b16 %v1141, %v1116
    %v1517 = vpack.c.b16 %v1142, %v1117
    %v1518 = vpack.c.b16 %v1143, %v1118
    %v1519 = vpack.c.b16 %v1144, %v1119
    %v1520 = vpack.c.b16 %v1145, %v1120
    %v1521 = vpack.c.b16 %v1146, %v1121
    %v1522 = vpack.c.b16 %v1147, %v1122
    %v1523 = vpack.c.b16 %v1148, %v1123
    %v1524 = vpack.c.b16 %v1149, %v1124
    %v1525 = vpack.c.b16 %v1150, %v1125
    %v1526 = vpack.c.b16 %v1176, %v1151
    %v1527 = vpack.c.b16 %v1177, %v1152
    %v1528 = vpack.c.b16 %v1178, %v1153
    %v1529 = vpack.c.b16 %v1179, %v1154
    %v1530 = vpack.c.b16 %v1180, %v1155
    %v1531 = vpack.c.b16 %v1181, %v1156
    %v1532 = vpack.c.b16 %v1182, %v1157
    %v1533 = vpack.c.b16 %v1183, %v1158
    %v1534 = vpack.c.b16 %v1184, %v1159
    %v1535 = vpack.c.b16 %v1185, %v1160
    %v1536 = vpack.c.b16 %v1186, %v1161
    %v1537 = vpack.c.b16 %v1187, %v1162
    %v1538 = vpack.c.b16 %v1188, %v1163
    %v1539 = vpack.c.b16 %v1189, %v1164
    %v1540 = vpack.c.b16 %v1190, %v1165
    %v1541 = vpack.c.b16 %v1191, %v1166
    %v1542 = vpack.c.b16 %v1192, %v1167
    %v1543 = vpack.c.b16 %v1193, %v1168
    %v1544 = vpack.c.b16 %v1194, %v1169
    %v1545 = vpack.c.b16 %v1195, %v1170
    %v1546 = vpack.c.b16 %v1196, %v1171
    %v1547 = vpack.c.b16 %v1197, %v1172
    %v1548 = vpack.c.b16 %v1198, %v1173
    %v1549 = vpack.c.b16 %v1199, %v1174
    %v1550 = vpack.c.b16 %v1200, %v1175
    %v1551 = vpack.c.b16 %v1226, %v1201
    %v1552 = vpack.c.b16 %v1227, %v1202
    %v1553 = vpack.c.b16 %v1228, %v1203
    %v1554 = vpack.c.b16 %v1229, %v1204
    %v1555 = vpack.c.b16 %v1230, %v1205
    %v1556 = vpack.c.b16 %v1231, %v1206
    %v1557 = vpack.c.b16 %v1232, %v1207
    %v1558 = vpack.c.b16 %v1233, %v1208
    %v1559 = vpack.c.b16 %v1234, %v1209
    %v1560 = vpack.c.b16 %v1235, %v1210
    %v1561 = vpack.c.b16 %v1236, %v1211
    %v1562 = vpack.c.b16 %v1237, %v1212
    %v1563 = vpack.c.b16 %v1238, %v1213
    %v1564 = vpack.c.b16 %v1239, %v1214
    %v1565 = vpack.c.b16 %v1240, %v1215
    %v1566 = vpack.c.b16 %v1241, %v1216
    %v1567 = vpack.c.b16 %v1242, %v1217
    %v1568 = vpack.c.b16 %v1243, %v1218
    %v1569 = vpack.c.b16 %v1244, %v1219
    %v1570 = vpack.c.b16 %v1245, %v1220
    %v1571 = vpack.c.b16 %v1246, %v1221
    %v1572 = vpack.c.b16 %v1247, %v1222
    %v1573 = vpack.c.b16 %v1248, %v1223
    %v1574 = vpack.c.b16 %v1249, %v1224
    %v1575 = vpack.c.b16 %v1250, %v1225
    %v1576 = vpack.c.b16 %v1276, %v1251
    %v1577 = vpack.c.b16 %v1277, %v1252
    %v1578 = vpack.c.b16 %v1278, %v1253
    %v1579 = vpack.c.b16 %v1279, %v1254
    %v1580 = vpack.c.b16 %v1280, %v1255
    %v1581 = vpack.c.b16 %v1281, %v1256
    %v1582 = vpack.c.b16 %v1282, %v1257
    %v1583 = vpack.c.b16 %v1283, %v1258
    %v1584 = vpack.c.b16 %v1284, %v1259
    %v1585 = vpack.c.b16 %v1285, %v1260
    %v1586 = vpack.c.b16 %v1286, %v1261
    %v1587 = vpack.c.b16 %v1287, %v1262
    %v1588 = vpack.c.b16 %v1288, %v1263
    %v1589 = vpack.c.b16 %v1289, %v1264
    %v1590 = vpack.c.b16 %v1290, %v1265
    %v1591 = vpack.c.b16 %v1291, %v1266
    %v1592 = vpack.c.b16 %v1292, %v1267
    %v1593 = vpack.c.b16 %v1293, %v1268
    %v1594 = vpack.c.b16 %v1294, %v1269
    %v1595 = vpack.c.b16 %v1295, %v1270
    %v1596 = vpack.c.b16 %v1296, %v1271
    %v1597 = vpack.c.b16 %v1297, %v1272
    %v1598 = vpack.c.b16 %v1298, %v1273
    %v1599 = vpack.c.b16 %v1299, %v1274
    %v1600 = vpack.c.b16 %v1300, %v1275
    %v1902 = vsel %vm72, %v66, 0
    %1904 = vmatpush.bf16.msra.mxu0 %v1476
    %1905 = vmatpush.bf16.msra.mxu0 %v1451
    %1906 = vmatpush.bf16.msra.mxu0 %v1426
    %1907 = vmatpush.bf16.msra.mxu0 %v1401
    %1908 = vmatpush.bf16.msra.mxu0 %v1376
    %1909 = vmatpush.bf16.msra.mxu0 %v1351
    %1910 = vmatpush.bf16.msra.mxu0 %v1326
    %1911 = vmatpush.bf16.msra.mxu0 %v1301
    %1912 = vmatmul.bf16.gmra.mxu0 %v75
    %v1913 = vpop.f32.mrf.mxu0
    %v1914 = vadd.f32 0.0, %v1913
    %v1915 = vpop.f32.mrf.mxu0
    %1916 = vdwg.mxu0
    %1917 = vmatpush.bf16.msra.mxu0 0
    %1918 = vmatpush.bf16.msra.mxu0 0
    %1919 = vmatpush.bf16.msra.mxu0 0
    %1920 = vmatpush.bf16.msra.mxu0 0
    %1921 = vmatpush.bf16.msra.mxu0 %v1576
    %1922 = vmatpush.bf16.msra.mxu0 %v1551
    %1923 = vmatpush.bf16.msra.mxu0 %v1526
    %1924 = vmatpush.bf16.msra.mxu0 %v1501
    %1925 = vmatmul.bf16.gmra.mxu0 %v1902
    %v1926 = vpop.f32.mrf.mxu0
    %v1927 = vadd.f32 %v1914, %v1926
    %v1928 = vpop.f32.mrf.mxu0
    %1929 = vdwg.mxu0
    %1930 = vmatpush.bf16.msra.mxu0 %v1477
    %1931 = vmatpush.bf16.msra.mxu0 %v1452
    %1932 = vmatpush.bf16.msra.mxu0 %v1427
    %1933 = vmatpush.bf16.msra.mxu0 %v1402
    %1934 = vmatpush.bf16.msra.mxu0 %v1377
    %1935 = vmatpush.bf16.msra.mxu0 %v1352
    %1936 = vmatpush.bf16.msra.mxu0 %v1327
    %1937 = vmatpush.bf16.msra.mxu0 %v1302
    %1938 = vmatmul.bf16.gmra.mxu0 %v75
    %v1939 = vpop.f32.mrf.mxu0
    %v1940 = vadd.f32 0.0, %v1939
    %v1941 = vpop.f32.mrf.mxu0
    %1942 = vdwg.mxu0
    %1943 = vmatpush.bf16.msra.mxu0 0
    %1944 = vmatpush.bf16.msra.mxu0 0
    %1945 = vmatpush.bf16.msra.mxu0 0
    %1946 = vmatpush.bf16.msra.mxu0 0
    %1947 = vmatpush.bf16.msra.mxu0 %v1577
    %1948 = vmatpush.bf16.msra.mxu0 %v1552
    %1949 = vmatpush.bf16.msra.mxu0 %v1527
    %1950 = vmatpush.bf16.msra.mxu0 %v1502
    %1951 = vmatmul.bf16.gmra.mxu0 %v1902
    %v1952 = vpop.f32.mrf.mxu0
    %v1953 = vadd.f32 %v1940, %v1952
    %v1954 = vpop.f32.mrf.mxu0
    %1955 = vdwg.mxu0
    %1956 = vmatpush.bf16.msra.mxu0 %v1478
    %1957 = vmatpush.bf16.msra.mxu0 %v1453
    %1958 = vmatpush.bf16.msra.mxu0 %v1428
    %1959 = vmatpush.bf16.msra.mxu0 %v1403
    %1960 = vmatpush.bf16.msra.mxu0 %v1378
    %1961 = vmatpush.bf16.msra.mxu0 %v1353
    %1962 = vmatpush.bf16.msra.mxu0 %v1328
    %1963 = vmatpush.bf16.msra.mxu0 %v1303
    %1964 = vmatmul.bf16.gmra.mxu0 %v75
    %v1965 = vpop.f32.mrf.mxu0
    %v1966 = vadd.f32 0.0, %v1965
    %v1967 = vpop.f32.mrf.mxu0
    %1968 = vdwg.mxu0
    %1969 = vmatpush.bf16.msra.mxu0 0
    %1970 = vmatpush.bf16.msra.mxu0 0
    %1971 = vmatpush.bf16.msra.mxu0 0
    %1972 = vmatpush.bf16.msra.mxu0 0
    %1973 = vmatpush.bf16.msra.mxu0 %v1578
    %1974 = vmatpush.bf16.msra.mxu0 %v1553
    %1975 = vmatpush.bf16.msra.mxu0 %v1528
    %1976 = vmatpush.bf16.msra.mxu0 %v1503
    %1977 = vmatmul.bf16.gmra.mxu0 %v1902
    %v1978 = vpop.f32.mrf.mxu0
    %v1979 = vadd.f32 %v1966, %v1978
    %v1980 = vpop.f32.mrf.mxu0
    %1981 = vdwg.mxu0
    %1982 = vmatpush.bf16.msra.mxu0 %v1479
    %1983 = vmatpush.bf16.msra.mxu0 %v1454
    %1984 = vmatpush.bf16.msra.mxu0 %v1429
    %1985 = vmatpush.bf16.msra.mxu0 %v1404
    %1986 = vmatpush.bf16.msra.mxu0 %v1379
    %1987 = vmatpush.bf16.msra.mxu0 %v1354
    %1988 = vmatpush.bf16.msra.mxu0 %v1329
    %1989 = vmatpush.bf16.msra.mxu0 %v1304
    %1990 = vmatmul.bf16.gmra.mxu0 %v75
    %v1991 = vpop.f32.mrf.mxu0
    %v1992 = vadd.f32 0.0, %v1991
    %v1993 = vpop.f32.mrf.mxu0
    %1994 = vdwg.mxu0
    %1995 = vmatpush.bf16.msra.mxu0 0
    %1996 = vmatpush.bf16.msra.mxu0 0
    %1997 = vmatpush.bf16.msra.mxu0 0
    %1998 = vmatpush.bf16.msra.mxu0 0
    %1999 = vmatpush.bf16.msra.mxu0 %v1579
    %2000 = vmatpush.bf16.msra.mxu0 %v1554
    %2001 = vmatpush.bf16.msra.mxu0 %v1529
    %2002 = vmatpush.bf16.msra.mxu0 %v1504
    %2003 = vmatmul.bf16.gmra.mxu0 %v1902
    %v2004 = vpop.f32.mrf.mxu0
    %v2005 = vadd.f32 %v1992, %v2004
    %v2006 = vpop.f32.mrf.mxu0
    %2007 = vdwg.mxu0
    %2008 = vmatpush.bf16.msra.mxu0 %v1480
    %2009 = vmatpush.bf16.msra.mxu0 %v1455
    %2010 = vmatpush.bf16.msra.mxu0 %v1430
    %2011 = vmatpush.bf16.msra.mxu0 %v1405
    %2012 = vmatpush.bf16.msra.mxu0 %v1380
    %2013 = vmatpush.bf16.msra.mxu0 %v1355
    %2014 = vmatpush.bf16.msra.mxu0 %v1330
    %2015 = vmatpush.bf16.msra.mxu0 %v1305
    %2016 = vmatmul.bf16.gmra.mxu0 %v75
    %v2017 = vpop.f32.mrf.mxu0
    %v2018 = vadd.f32 0.0, %v2017
    %v2019 = vpop.f32.mrf.mxu0
    %2020 = vdwg.mxu0
    %2021 = vmatpush.bf16.msra.mxu0 0
    %2022 = vmatpush.bf16.msra.mxu0 0
    %2023 = vmatpush.bf16.msra.mxu0 0
    %2024 = vmatpush.bf16.msra.mxu0 0
    %2025 = vmatpush.bf16.msra.mxu0 %v1580
    %2026 = vmatpush.bf16.msra.mxu0 %v1555
    %2027 = vmatpush.bf16.msra.mxu0 %v1530
    %2028 = vmatpush.bf16.msra.mxu0 %v1505
    %2029 = vmatmul.bf16.gmra.mxu0 %v1902
    %v2030 = vpop.f32.mrf.mxu0
    %v2031 = vadd.f32 %v2018, %v2030
    %v2032 = vpop.f32.mrf.mxu0
    %2033 = vdwg.mxu0
    %2034 = vmatpush.bf16.msra.mxu0 %v1481
    %2035 = vmatpush.bf16.msra.mxu0 %v1456
    %2036 = vmatpush.bf16.msra.mxu0 %v1431
    %2037 = vmatpush.bf16.msra.mxu0 %v1406
    %2038 = vmatpush.bf16.msra.mxu0 %v1381
    %2039 = vmatpush.bf16.msra.mxu0 %v1356
    %2040 = vmatpush.bf16.msra.mxu0 %v1331
    %2041 = vmatpush.bf16.msra.mxu0 %v1306
    %2042 = vmatmul.bf16.gmra.mxu0 %v75
    %v2043 = vpop.f32.mrf.mxu0
    %v2044 = vadd.f32 0.0, %v2043
    %v2045 = vpop.f32.mrf.mxu0
    %2046 = vdwg.mxu0
    %2047 = vmatpush.bf16.msra.mxu0 0
    %2048 = vmatpush.bf16.msra.mxu0 0
    %2049 = vmatpush.bf16.msra.mxu0 0
    %2050 = vmatpush.bf16.msra.mxu0 0
    %2051 = vmatpush.bf16.msra.mxu0 %v1581
    %2052 = vmatpush.bf16.msra.mxu0 %v1556
    %2053 = vmatpush.bf16.msra.mxu0 %v1531
    %2054 = vmatpush.bf16.msra.mxu0 %v1506
    %2055 = vmatmul.bf16.gmra.mxu0 %v1902
    %v2056 = vpop.f32.mrf.mxu0
    %v2057 = vadd.f32 %v2044, %v2056
    %v2058 = vpop.f32.mrf.mxu0
    %2059 = vdwg.mxu0
    %2060 = vmatpush.bf16.msra.mxu0 %v1482
    %2061 = vmatpush.bf16.msra.mxu0 %v1457
    %2062 = vmatpush.bf16.msra.mxu0 %v1432
    %2063 = vmatpush.bf16.msra.mxu0 %v1407
    %2064 = vmatpush.bf16.msra.mxu0 %v1382
    %2065 = vmatpush.bf16.msra.mxu0 %v1357
    %2066 = vmatpush.bf16.msra.mxu0 %v1332
    %2067 = vmatpush.bf16.msra.mxu0 %v1307
    %2068 = vmatmul.bf16.gmra.mxu0 %v75
    %v2069 = vpop.f32.mrf.mxu0
    %v2070 = vadd.f32 0.0, %v2069
    %v2071 = vpop.f32.mrf.mxu0
    %2072 = vdwg.mxu0
    %2073 = vmatpush.bf16.msra.mxu0 0
    %2074 = vmatpush.bf16.msra.mxu0 0
    %2075 = vmatpush.bf16.msra.mxu0 0
    %2076 = vmatpush.bf16.msra.mxu0 0
    %2077 = vmatpush.bf16.msra.mxu0 %v1582
    %2078 = vmatpush.bf16.msra.mxu0 %v1557
    %2079 = vmatpush.bf16.msra.mxu0 %v1532
    %2080 = vmatpush.bf16.msra.mxu0 %v1507
    %2081 = vmatmul.bf16.gmra.mxu0 %v1902
    %v2082 = vpop.f32.mrf.mxu0
    %v2083 = vadd.f32 %v2070, %v2082
    %v2084 = vpop.f32.mrf.mxu0
    %2085 = vdwg.mxu0
    %2086 = vmatpush.bf16.msra.mxu0 %v1483
    %2087 = vmatpush.bf16.msra.mxu0 %v1458
    %2088 = vmatpush.bf16.msra.mxu0 %v1433
    %2089 = vmatpush.bf16.msra.mxu0 %v1408
    %2090 = vmatpush.bf16.msra.mxu0 %v1383
    %2091 = vmatpush.bf16.msra.mxu0 %v1358
    %2092 = vmatpush.bf16.msra.mxu0 %v1333
    %2093 = vmatpush.bf16.msra.mxu0 %v1308
    %2094 = vmatmul.bf16.gmra.mxu0 %v75
    %v2095 = vpop.f32.mrf.mxu0
    %v2096 = vadd.f32 0.0, %v2095
    %v2097 = vpop.f32.mrf.mxu0
    %2098 = vdwg.mxu0
    %2099 = vmatpush.bf16.msra.mxu0 0
    %2100 = vmatpush.bf16.msra.mxu0 0
    %2101 = vmatpush.bf16.msra.mxu0 0
    %2102 = vmatpush.bf16.msra.mxu0 0
    %2103 = vmatpush.bf16.msra.mxu0 %v1583
    %2104 = vmatpush.bf16.msra.mxu0 %v1558
    %2105 = vmatpush.bf16.msra.mxu0 %v1533
    %2106 = vmatpush.bf16.msra.mxu0 %v1508
    %2107 = vmatmul.bf16.gmra.mxu0 %v1902
    %v2108 = vpop.f32.mrf.mxu0
    %v2109 = vadd.f32 %v2096, %v2108
    %v2110 = vpop.f32.mrf.mxu0
    %2111 = vdwg.mxu0
    %2112 = vmatpush.bf16.msra.mxu0 %v1484
    %2113 = vmatpush.bf16.msra.mxu0 %v1459
    %2114 = vmatpush.bf16.msra.mxu0 %v1434
    %2115 = vmatpush.bf16.msra.mxu0 %v1409
    %2116 = vmatpush.bf16.msra.mxu0 %v1384
    %2117 = vmatpush.bf16.msra.mxu0 %v1359
    %2118 = vmatpush.bf16.msra.mxu0 %v1334
    %2119 = vmatpush.bf16.msra.mxu0 %v1309
    %2120 = vmatmul.bf16.gmra.mxu0 %v75
    %v2121 = vpop.f32.mrf.mxu0
    %v2122 = vadd.f32 0.0, %v2121
    %v2123 = vpop.f32.mrf.mxu0
    %2124 = vdwg.mxu0
    %2125 = vmatpush.bf16.msra.mxu0 0
    %2126 = vmatpush.bf16.msra.mxu0 0
    %2127 = vmatpush.bf16.msra.mxu0 0
    %2128 = vmatpush.bf16.msra.mxu0 0
    %2129 = vmatpush.bf16.msra.mxu0 %v1584
    %2130 = vmatpush.bf16.msra.mxu0 %v1559
    %2131 = vmatpush.bf16.msra.mxu0 %v1534
    %2132 = vmatpush.bf16.msra.mxu0 %v1509
    %2133 = vmatmul.bf16.gmra.mxu0 %v1902
    %v2134 = vpop.f32.mrf.mxu0
    %v2135 = vadd.f32 %v2122, %v2134
    %v2136 = vpop.f32.mrf.mxu0
    %2137 = vdwg.mxu0
    %2138 = vmatpush.bf16.msra.mxu0 %v1485
    %2139 = vmatpush.bf16.msra.mxu0 %v1460
    %2140 = vmatpush.bf16.msra.mxu0 %v1435
    %2141 = vmatpush.bf16.msra.mxu0 %v1410
    %2142 = vmatpush.bf16.msra.mxu0 %v1385
    %2143 = vmatpush.bf16.msra.mxu0 %v1360
    %2144 = vmatpush.bf16.msra.mxu0 %v1335
    %2145 = vmatpush.bf16.msra.mxu0 %v1310
    %2146 = vmatmul.bf16.gmra.mxu0 %v75
    %v2147 = vpop.f32.mrf.mxu0
    %v2148 = vadd.f32 0.0, %v2147
    %v2149 = vpop.f32.mrf.mxu0
    %2150 = vdwg.mxu0
    %2151 = vmatpush.bf16.msra.mxu0 0
    %2152 = vmatpush.bf16.msra.mxu0 0
    %2153 = vmatpush.bf16.msra.mxu0 0
    %2154 = vmatpush.bf16.msra.mxu0 0
    %2155 = vmatpush.bf16.msra.mxu0 %v1585
    %2156 = vmatpush.bf16.msra.mxu0 %v1560
    %2157 = vmatpush.bf16.msra.mxu0 %v1535
    %2158 = vmatpush.bf16.msra.mxu0 %v1510
    %2159 = vmatmul.bf16.gmra.mxu0 %v1902
    %v2160 = vpop.f32.mrf.mxu0
    %v2161 = vadd.f32 %v2148, %v2160
    %v2162 = vpop.f32.mrf.mxu0
    %2163 = vdwg.mxu0
    %2164 = vmatpush.bf16.msra.mxu0 %v1486
    %2165 = vmatpush.bf16.msra.mxu0 %v1461
    %2166 = vmatpush.bf16.msra.mxu0 %v1436
    %2167 = vmatpush.bf16.msra.mxu0 %v1411
    %2168 = vmatpush.bf16.msra.mxu0 %v1386
    %2169 = vmatpush.bf16.msra.mxu0 %v1361
    %2170 = vmatpush.bf16.msra.mxu0 %v1336
    %2171 = vmatpush.bf16.msra.mxu0 %v1311
    %2172 = vmatmul.bf16.gmra.mxu0 %v75
    %v2173 = vpop.f32.mrf.mxu0
    %v2174 = vadd.f32 0.0, %v2173
    %v2175 = vpop.f32.mrf.mxu0
    %2176 = vdwg.mxu0
    %2177 = vmatpush.bf16.msra.mxu0 0
    %2178 = vmatpush.bf16.msra.mxu0 0
    %2179 = vmatpush.bf16.msra.mxu0 0
    %2180 = vmatpush.bf16.msra.mxu0 0
    %2181 = vmatpush.bf16.msra.mxu0 %v1586
    %2182 = vmatpush.bf16.msra.mxu0 %v1561
    %2183 = vmatpush.bf16.msra.mxu0 %v1536
    %2184 = vmatpush.bf16.msra.mxu0 %v1511
    %2185 = vmatmul.bf16.gmra.mxu0 %v1902
    %v2186 = vpop.f32.mrf.mxu0
    %v2187 = vadd.f32 %v2174, %v2186
    %v2188 = vpop.f32.mrf.mxu0
    %2189 = vdwg.mxu0
    %2190 = vmatpush.bf16.msra.mxu0 %v1487
    %2191 = vmatpush.bf16.msra.mxu0 %v1462
    %2192 = vmatpush.bf16.msra.mxu0 %v1437
    %2193 = vmatpush.bf16.msra.mxu0 %v1412
    %2194 = vmatpush.bf16.msra.mxu0 %v1387
    %2195 = vmatpush.bf16.msra.mxu0 %v1362
    %2196 = vmatpush.bf16.msra.mxu0 %v1337
    %2197 = vmatpush.bf16.msra.mxu0 %v1312
    %2198 = vmatmul.bf16.gmra.mxu0 %v75
    %v2199 = vpop.f32.mrf.mxu0
    %v2200 = vadd.f32 0.0, %v2199
    %v2201 = vpop.f32.mrf.mxu0
    %2202 = vdwg.mxu0
    %2203 = vmatpush.bf16.msra.mxu0 0
    %2204 = vmatpush.bf16.msra.mxu0 0
    %2205 = vmatpush.bf16.msra.mxu0 0
    %2206 = vmatpush.bf16.msra.mxu0 0
    %2207 = vmatpush.bf16.msra.mxu0 %v1587
    %2208 = vmatpush.bf16.msra.mxu0 %v1562
    %2209 = vmatpush.bf16.msra.mxu0 %v1537
    %2210 = vmatpush.bf16.msra.mxu0 %v1512
    %2211 = vmatmul.bf16.gmra.mxu0 %v1902
    %v2212 = vpop.f32.mrf.mxu0
    %v2213 = vadd.f32 %v2200, %v2212
    %v2214 = vpop.f32.mrf.mxu0
    %2215 = vdwg.mxu0
    %2216 = vmatpush.bf16.msra.mxu0 %v1488
    %2217 = vmatpush.bf16.msra.mxu0 %v1463
    %2218 = vmatpush.bf16.msra.mxu0 %v1438
    %2219 = vmatpush.bf16.msra.mxu0 %v1413
    %2220 = vmatpush.bf16.msra.mxu0 %v1388
    %2221 = vmatpush.bf16.msra.mxu0 %v1363
    %2222 = vmatpush.bf16.msra.mxu0 %v1338
    %2223 = vmatpush.bf16.msra.mxu0 %v1313
    %2224 = vmatmul.bf16.gmra.mxu0 %v75
    %v2225 = vpop.f32.mrf.mxu0
    %v2226 = vadd.f32 0.0, %v2225
    %v2227 = vpop.f32.mrf.mxu0
    %2228 = vdwg.mxu0
    %2229 = vmatpush.bf16.msra.mxu0 0
    %2230 = vmatpush.bf16.msra.mxu0 0
    %2231 = vmatpush.bf16.msra.mxu0 0
    %2232 = vmatpush.bf16.msra.mxu0 0
    %2233 = vmatpush.bf16.msra.mxu0 %v1588
    %2234 = vmatpush.bf16.msra.mxu0 %v1563
    %2235 = vmatpush.bf16.msra.mxu0 %v1538
    %2236 = vmatpush.bf16.msra.mxu0 %v1513
    %2237 = vmatmul.bf16.gmra.mxu0 %v1902
    %v2238 = vpop.f32.mrf.mxu0
    %v2239 = vadd.f32 %v2226, %v2238
    %v2240 = vpop.f32.mrf.mxu0
    %2241 = vdwg.mxu0
    %2242 = vmatpush.bf16.msra.mxu0 %v1489
    %2243 = vmatpush.bf16.msra.mxu0 %v1464
    %2244 = vmatpush.bf16.msra.mxu0 %v1439
    %2245 = vmatpush.bf16.msra.mxu0 %v1414
    %2246 = vmatpush.bf16.msra.mxu0 %v1389
    %2247 = vmatpush.bf16.msra.mxu0 %v1364
    %2248 = vmatpush.bf16.msra.mxu0 %v1339
    %2249 = vmatpush.bf16.msra.mxu0 %v1314
    %2250 = vmatmul.bf16.gmra.mxu0 %v75
    %v2251 = vpop.f32.mrf.mxu0
    %v2252 = vadd.f32 0.0, %v2251
    %v2253 = vpop.f32.mrf.mxu0
    %2254 = vdwg.mxu0
    %2255 = vmatpush.bf16.msra.mxu0 0
    %2256 = vmatpush.bf16.msra.mxu0 0
    %2257 = vmatpush.bf16.msra.mxu0 0
    %2258 = vmatpush.bf16.msra.mxu0 0
    %2259 = vmatpush.bf16.msra.mxu0 %v1589
    %2260 = vmatpush.bf16.msra.mxu0 %v1564
    %2261 = vmatpush.bf16.msra.mxu0 %v1539
    %2262 = vmatpush.bf16.msra.mxu0 %v1514
    %2263 = vmatmul.bf16.gmra.mxu0 %v1902
    %v2264 = vpop.f32.mrf.mxu0
    %v2265 = vadd.f32 %v2252, %v2264
    %v2266 = vpop.f32.mrf.mxu0
    %2267 = vdwg.mxu0
    %2268 = vmatpush.bf16.msra.mxu0 %v1490
    %2269 = vmatpush.bf16.msra.mxu0 %v1465
    %2270 = vmatpush.bf16.msra.mxu0 %v1440
    %2271 = vmatpush.bf16.msra.mxu0 %v1415
    %2272 = vmatpush.bf16.msra.mxu0 %v1390
    %2273 = vmatpush.bf16.msra.mxu0 %v1365
    %2274 = vmatpush.bf16.msra.mxu0 %v1340
    %2275 = vmatpush.bf16.msra.mxu0 %v1315
    %2276 = vmatmul.bf16.gmra.mxu0 %v75
    %v2277 = vpop.f32.mrf.mxu0
    %v2278 = vadd.f32 0.0, %v2277
    %v2279 = vpop.f32.mrf.mxu0
    %2280 = vdwg.mxu0
    %2281 = vmatpush.bf16.msra.mxu0 0
    %2282 = vmatpush.bf16.msra.mxu0 0
    %2283 = vmatpush.bf16.msra.mxu0 0
    %2284 = vmatpush.bf16.msra.mxu0 0
    %2285 = vmatpush.bf16.msra.mxu0 %v1590
    %2286 = vmatpush.bf16.msra.mxu0 %v1565
    %2287 = vmatpush.bf16.msra.mxu0 %v1540
    %2288 = vmatpush.bf16.msra.mxu0 %v1515
    %2289 = vmatmul.bf16.gmra.mxu0 %v1902
    %v2290 = vpop.f32.mrf.mxu0
    %v2291 = vadd.f32 %v2278, %v2290
    %v2292 = vpop.f32.mrf.mxu0
    %2293 = vdwg.mxu0
    %2294 = vmatpush.bf16.msra.mxu0 %v1491
    %2295 = vmatpush.bf16.msra.mxu0 %v1466
    %2296 = vmatpush.bf16.msra.mxu0 %v1441
    %2297 = vmatpush.bf16.msra.mxu0 %v1416
    %2298 = vmatpush.bf16.msra.mxu0 %v1391
    %2299 = vmatpush.bf16.msra.mxu0 %v1366
    %2300 = vmatpush.bf16.msra.mxu0 %v1341
    %2301 = vmatpush.bf16.msra.mxu0 %v1316
    %2302 = vmatmul.bf16.gmra.mxu0 %v75
    %v2303 = vpop.f32.mrf.mxu0
    %v2304 = vadd.f32 0.0, %v2303
    %v2305 = vpop.f32.mrf.mxu0
    %2306 = vdwg.mxu0
    %2307 = vmatpush.bf16.msra.mxu0 0
    %2308 = vmatpush.bf16.msra.mxu0 0
    %2309 = vmatpush.bf16.msra.mxu0 0
    %2310 = vmatpush.bf16.msra.mxu0 0
    %2311 = vmatpush.bf16.msra.mxu0 %v1591
    %2312 = vmatpush.bf16.msra.mxu0 %v1566
    %2313 = vmatpush.bf16.msra.mxu0 %v1541
    %2314 = vmatpush.bf16.msra.mxu0 %v1516
    %2315 = vmatmul.bf16.gmra.mxu0 %v1902
    %v2316 = vpop.f32.mrf.mxu0
    %v2317 = vadd.f32 %v2304, %v2316
    %v2318 = vpop.f32.mrf.mxu0
    %2319 = vdwg.mxu0
    %2320 = vmatpush.bf16.msra.mxu0 %v1492
    %2321 = vmatpush.bf16.msra.mxu0 %v1467
    %2322 = vmatpush.bf16.msra.mxu0 %v1442
    %2323 = vmatpush.bf16.msra.mxu0 %v1417
    %2324 = vmatpush.bf16.msra.mxu0 %v1392
    %2325 = vmatpush.bf16.msra.mxu0 %v1367
    %2326 = vmatpush.bf16.msra.mxu0 %v1342
    %2327 = vmatpush.bf16.msra.mxu0 %v1317
    %2328 = vmatmul.bf16.gmra.mxu0 %v75
    %v2329 = vpop.f32.mrf.mxu0
    %v2330 = vadd.f32 0.0, %v2329
    %v2331 = vpop.f32.mrf.mxu0
    %2332 = vdwg.mxu0
    %2333 = vmatpush.bf16.msra.mxu0 0
    %2334 = vmatpush.bf16.msra.mxu0 0
    %2335 = vmatpush.bf16.msra.mxu0 0
    %2336 = vmatpush.bf16.msra.mxu0 0
    %2337 = vmatpush.bf16.msra.mxu0 %v1592
    %2338 = vmatpush.bf16.msra.mxu0 %v1567
    %2339 = vmatpush.bf16.msra.mxu0 %v1542
    %2340 = vmatpush.bf16.msra.mxu0 %v1517
    %2341 = vmatmul.bf16.gmra.mxu0 %v1902
    %v2342 = vpop.f32.mrf.mxu0
    %v2343 = vadd.f32 %v2330, %v2342
    %v2344 = vpop.f32.mrf.mxu0
    %2345 = vdwg.mxu0
    %2346 = vmatpush.bf16.msra.mxu0 %v1493
    %2347 = vmatpush.bf16.msra.mxu0 %v1468
    %2348 = vmatpush.bf16.msra.mxu0 %v1443
    %2349 = vmatpush.bf16.msra.mxu0 %v1418
    %2350 = vmatpush.bf16.msra.mxu0 %v1393
    %2351 = vmatpush.bf16.msra.mxu0 %v1368
    %2352 = vmatpush.bf16.msra.mxu0 %v1343
    %2353 = vmatpush.bf16.msra.mxu0 %v1318
    %2354 = vmatmul.bf16.gmra.mxu0 %v75
    %v2355 = vpop.f32.mrf.mxu0
    %v2356 = vadd.f32 0.0, %v2355
    %v2357 = vpop.f32.mrf.mxu0
    %2358 = vdwg.mxu0
    %2359 = vmatpush.bf16.msra.mxu0 0
    %2360 = vmatpush.bf16.msra.mxu0 0
    %2361 = vmatpush.bf16.msra.mxu0 0
    %2362 = vmatpush.bf16.msra.mxu0 0
    %2363 = vmatpush.bf16.msra.mxu0 %v1593
    %2364 = vmatpush.bf16.msra.mxu0 %v1568
    %2365 = vmatpush.bf16.msra.mxu0 %v1543
    %2366 = vmatpush.bf16.msra.mxu0 %v1518
    %2367 = vmatmul.bf16.gmra.mxu0 %v1902
    %v2368 = vpop.f32.mrf.mxu0
    %v2369 = vadd.f32 %v2356, %v2368
    %v2370 = vpop.f32.mrf.mxu0
    %2371 = vdwg.mxu0
    %2372 = vmatpush.bf16.msra.mxu0 %v1494
    %2373 = vmatpush.bf16.msra.mxu0 %v1469
    %2374 = vmatpush.bf16.msra.mxu0 %v1444
    %2375 = vmatpush.bf16.msra.mxu0 %v1419
    %2376 = vmatpush.bf16.msra.mxu0 %v1394
    %2377 = vmatpush.bf16.msra.mxu0 %v1369
    %2378 = vmatpush.bf16.msra.mxu0 %v1344
    %2379 = vmatpush.bf16.msra.mxu0 %v1319
    %2380 = vmatmul.bf16.gmra.mxu0 %v75
    %v2381 = vpop.f32.mrf.mxu0
    %v2382 = vadd.f32 0.0, %v2381
    %v2383 = vpop.f32.mrf.mxu0
    %2384 = vdwg.mxu0
    %2385 = vmatpush.bf16.msra.mxu0 0
    %2386 = vmatpush.bf16.msra.mxu0 0
    %2387 = vmatpush.bf16.msra.mxu0 0
    %2388 = vmatpush.bf16.msra.mxu0 0
    %2389 = vmatpush.bf16.msra.mxu0 %v1594
    %2390 = vmatpush.bf16.msra.mxu0 %v1569
    %2391 = vmatpush.bf16.msra.mxu0 %v1544
    %2392 = vmatpush.bf16.msra.mxu0 %v1519
    %2393 = vmatmul.bf16.gmra.mxu0 %v1902
    %v2394 = vpop.f32.mrf.mxu0
    %v2395 = vadd.f32 %v2382, %v2394
    %v2396 = vpop.f32.mrf.mxu0
    %2397 = vdwg.mxu0
    %2398 = vmatpush.bf16.msra.mxu0 %v1495
    %2399 = vmatpush.bf16.msra.mxu0 %v1470
    %2400 = vmatpush.bf16.msra.mxu0 %v1445
    %2401 = vmatpush.bf16.msra.mxu0 %v1420
    %2402 = vmatpush.bf16.msra.mxu0 %v1395
    %2403 = vmatpush.bf16.msra.mxu0 %v1370
    %2404 = vmatpush.bf16.msra.mxu0 %v1345
    %2405 = vmatpush.bf16.msra.mxu0 %v1320
    %2406 = vmatmul.bf16.gmra.mxu0 %v75
    %v2407 = vpop.f32.mrf.mxu0
    %v2408 = vadd.f32 0.0, %v2407
    %v2409 = vpop.f32.mrf.mxu0
    %2410 = vdwg.mxu0
    %2411 = vmatpush.bf16.msra.mxu0 0
    %2412 = vmatpush.bf16.msra.mxu0 0
    %2413 = vmatpush.bf16.msra.mxu0 0
    %2414 = vmatpush.bf16.msra.mxu0 0
    %2415 = vmatpush.bf16.msra.mxu0 %v1595
    %2416 = vmatpush.bf16.msra.mxu0 %v1570
    %2417 = vmatpush.bf16.msra.mxu0 %v1545
    %2418 = vmatpush.bf16.msra.mxu0 %v1520
    %2419 = vmatmul.bf16.gmra.mxu0 %v1902
    %v2420 = vpop.f32.mrf.mxu0
    %v2421 = vadd.f32 %v2408, %v2420
    %v2422 = vpop.f32.mrf.mxu0
    %2423 = vdwg.mxu0
    %2424 = vmatpush.bf16.msra.mxu0 %v1496
    %2425 = vmatpush.bf16.msra.mxu0 %v1471
    %2426 = vmatpush.bf16.msra.mxu0 %v1446
    %2427 = vmatpush.bf16.msra.mxu0 %v1421
    %2428 = vmatpush.bf16.msra.mxu0 %v1396
    %2429 = vmatpush.bf16.msra.mxu0 %v1371
    %2430 = vmatpush.bf16.msra.mxu0 %v1346
    %2431 = vmatpush.bf16.msra.mxu0 %v1321
    %2432 = vmatmul.bf16.gmra.mxu0 %v75
    %v2433 = vpop.f32.mrf.mxu0
    %v2434 = vadd.f32 0.0, %v2433
    %v2435 = vpop.f32.mrf.mxu0
    %2436 = vdwg.mxu0
    %2437 = vmatpush.bf16.msra.mxu0 0
    %2438 = vmatpush.bf16.msra.mxu0 0
    %2439 = vmatpush.bf16.msra.mxu0 0
    %2440 = vmatpush.bf16.msra.mxu0 0
    %2441 = vmatpush.bf16.msra.mxu0 %v1596
    %2442 = vmatpush.bf16.msra.mxu0 %v1571
    %2443 = vmatpush.bf16.msra.mxu0 %v1546
    %2444 = vmatpush.bf16.msra.mxu0 %v1521
    %2445 = vmatmul.bf16.gmra.mxu0 %v1902
    %v2446 = vpop.f32.mrf.mxu0
    %v2447 = vadd.f32 %v2434, %v2446
    %v2448 = vpop.f32.mrf.mxu0
    %2449 = vdwg.mxu0
    %2450 = vmatpush.bf16.msra.mxu0 %v1497
    %2451 = vmatpush.bf16.msra.mxu0 %v1472
    %2452 = vmatpush.bf16.msra.mxu0 %v1447
    %2453 = vmatpush.bf16.msra.mxu0 %v1422
    %2454 = vmatpush.bf16.msra.mxu0 %v1397
    %2455 = vmatpush.bf16.msra.mxu0 %v1372
    %2456 = vmatpush.bf16.msra.mxu0 %v1347
    %2457 = vmatpush.bf16.msra.mxu0 %v1322
    %2458 = vmatmul.bf16.gmra.mxu0 %v75
    %v2459 = vpop.f32.mrf.mxu0
    %v2460 = vadd.f32 0.0, %v2459
    %v2461 = vpop.f32.mrf.mxu0
    %2462 = vdwg.mxu0
    %2463 = vmatpush.bf16.msra.mxu0 0
    %2464 = vmatpush.bf16.msra.mxu0 0
    %2465 = vmatpush.bf16.msra.mxu0 0
    %2466 = vmatpush.bf16.msra.mxu0 0
    %2467 = vmatpush.bf16.msra.mxu0 %v1597
    %2468 = vmatpush.bf16.msra.mxu0 %v1572
    %2469 = vmatpush.bf16.msra.mxu0 %v1547
    %2470 = vmatpush.bf16.msra.mxu0 %v1522
    %2471 = vmatmul.bf16.gmra.mxu0 %v1902
    %v2472 = vpop.f32.mrf.mxu0
    %v2473 = vadd.f32 %v2460, %v2472
    %v2474 = vpop.f32.mrf.mxu0
    %2475 = vdwg.mxu0
    %2476 = vmatpush.bf16.msra.mxu0 %v1498
    %2477 = vmatpush.bf16.msra.mxu0 %v1473
    %2478 = vmatpush.bf16.msra.mxu0 %v1448
    %2479 = vmatpush.bf16.msra.mxu0 %v1423
    %2480 = vmatpush.bf16.msra.mxu0 %v1398
    %2481 = vmatpush.bf16.msra.mxu0 %v1373
    %2482 = vmatpush.bf16.msra.mxu0 %v1348
    %2483 = vmatpush.bf16.msra.mxu0 %v1323
    %2484 = vmatmul.bf16.gmra.mxu0 %v75
    %v2485 = vpop.f32.mrf.mxu0
    %v2486 = vadd.f32 0.0, %v2485
    %v2487 = vpop.f32.mrf.mxu0
    %2488 = vdwg.mxu0
    %2489 = vmatpush.bf16.msra.mxu0 0
    %2490 = vmatpush.bf16.msra.mxu0 0
    %2491 = vmatpush.bf16.msra.mxu0 0
    %2492 = vmatpush.bf16.msra.mxu0 0
    %2493 = vmatpush.bf16.msra.mxu0 %v1598
    %2494 = vmatpush.bf16.msra.mxu0 %v1573
    %2495 = vmatpush.bf16.msra.mxu0 %v1548
    %2496 = vmatpush.bf16.msra.mxu0 %v1523
    %2497 = vmatmul.bf16.gmra.mxu0 %v1902
    %v2498 = vpop.f32.mrf.mxu0
    %v2499 = vadd.f32 %v2486, %v2498
    %v2500 = vpop.f32.mrf.mxu0
    %2501 = vdwg.mxu0
    %2502 = vmatpush.bf16.msra.mxu0 %v1499
    %2503 = vmatpush.bf16.msra.mxu0 %v1474
    %2504 = vmatpush.bf16.msra.mxu0 %v1449
    %2505 = vmatpush.bf16.msra.mxu0 %v1424
    %2506 = vmatpush.bf16.msra.mxu0 %v1399
    %2507 = vmatpush.bf16.msra.mxu0 %v1374
    %2508 = vmatpush.bf16.msra.mxu0 %v1349
    %2509 = vmatpush.bf16.msra.mxu0 %v1324
    %2510 = vmatmul.bf16.gmra.mxu0 %v75
    %v2511 = vpop.f32.mrf.mxu0
    %v2512 = vadd.f32 0.0, %v2511
    %v2513 = vpop.f32.mrf.mxu0
    %2514 = vdwg.mxu0
    %2515 = vmatpush.bf16.msra.mxu0 0
    %2516 = vmatpush.bf16.msra.mxu0 0
    %2517 = vmatpush.bf16.msra.mxu0 0
    %2518 = vmatpush.bf16.msra.mxu0 0
    %2519 = vmatpush.bf16.msra.mxu0 %v1599
    %2520 = vmatpush.bf16.msra.mxu0 %v1574
    %2521 = vmatpush.bf16.msra.mxu0 %v1549
    %2522 = vmatpush.bf16.msra.mxu0 %v1524
    %2523 = vmatmul.bf16.gmra.mxu0 %v1902
    %v2524 = vpop.f32.mrf.mxu0
    %v2525 = vadd.f32 %v2512, %v2524
    %v2526 = vpop.f32.mrf.mxu0
    %2527 = vdwg.mxu0
    %2528 = vmatpush.bf16.msra.mxu0 %v1500
    %2529 = vmatpush.bf16.msra.mxu0 %v1475
    %2530 = vmatpush.bf16.msra.mxu0 %v1450
    %2531 = vmatpush.bf16.msra.mxu0 %v1425
    %2532 = vmatpush.bf16.msra.mxu0 %v1400
    %2533 = vmatpush.bf16.msra.mxu0 %v1375
    %2534 = vmatpush.bf16.msra.mxu0 %v1350
    %2535 = vmatpush.bf16.msra.mxu0 %v1325
    %2536 = vmatmul.bf16.gmra.mxu0 %v75
    %v2537 = vpop.f32.mrf.mxu0
    %v2538 = vadd.f32 0.0, %v2537
    %v2539 = vpop.f32.mrf.mxu0
    %2540 = vdwg.mxu0
    %2541 = vmatpush.bf16.msra.mxu0 0
    %2542 = vmatpush.bf16.msra.mxu0 0
    %2543 = vmatpush.bf16.msra.mxu0 0
    %2544 = vmatpush.bf16.msra.mxu0 0
    %2545 = vmatpush.bf16.msra.mxu0 %v1600
    %2546 = vmatpush.bf16.msra.mxu0 %v1575
    %2547 = vmatpush.bf16.msra.mxu0 %v1550
    %2548 = vmatpush.bf16.msra.mxu0 %v1525
    %2549 = vmatmul.bf16.gmra.mxu0 %v1902
    %v2550 = vpop.f32.mrf.mxu0
    %v2551 = vadd.f32 %v2538, %v2550
    %v2552 = vpop.f32.mrf.mxu0
    %2553 = vdwg.mxu0
    %v2554 = vld [vmem:[#allocation7] sm:$0xff]
    %v2555 = vld [vmem:[#allocation7 + $0x8] sm:$0xff]
    %v2556 = vld [vmem:[#allocation7 + $0x10] sm:$0xff]
    %v2557 = vld [vmem:[#allocation7 + $0x18] sm:$0x1]
    %v2562 = vperm.slane %v2554, 0
    %v2563 = vperm.slane %v2554, 1
    %v2564 = vperm.slane %v2554, 2
    %v2565 = vperm.slane %v2554, 3
    %v2566 = vperm.slane %v2554, 4
    %v2567 = vperm.slane %v2554, 5
    %v2568 = vperm.slane %v2554, 6
    %v2569 = vperm.slane %v2554, 7
    %v2570 = vperm.slane %v2555, 0
    %v2571 = vperm.slane %v2555, 1
    %v2572 = vperm.slane %v2555, 2
    %v2573 = vperm.slane %v2555, 3
    %v2574 = vperm.slane %v2555, 4
    %v2575 = vperm.slane %v2555, 5
    %v2576 = vperm.slane %v2555, 6
    %v2577 = vperm.slane %v2555, 7
    %v2578 = vperm.slane %v2556, 0
    %v2579 = vperm.slane %v2556, 1
    %v2580 = vperm.slane %v2556, 2
    %v2581 = vperm.slane %v2556, 3
    %v2582 = vperm.slane %v2556, 4
    %v2583 = vperm.slane %v2556, 5
    %v2584 = vperm.slane %v2556, 6
    %v2585 = vperm.slane %v2556, 7
    %v2586 = vperm.slane %v2557, 0
    %v2612 = vsub.f32 %v1927, %v2562
    %v2613 = vsub.f32 %v1953, %v2563
    %v2614 = vsub.f32 %v1979, %v2564
    %v2615 = vsub.f32 %v2005, %v2565
    %v2616 = vsub.f32 %v2031, %v2566
    %v2617 = vsub.f32 %v2057, %v2567
    %v2618 = vsub.f32 %v2083, %v2568
    %v2619 = vsub.f32 %v2109, %v2569
    %v2620 = vsub.f32 %v2135, %v2570
    %v2621 = vsub.f32 %v2161, %v2571
    %v2622 = vsub.f32 %v2187, %v2572
    %v2623 = vsub.f32 %v2213, %v2573
    %v2624 = vsub.f32 %v2239, %v2574
    %v2625 = vsub.f32 %v2265, %v2575
    %v2626 = vsub.f32 %v2291, %v2576
    %v2627 = vsub.f32 %v2317, %v2577
    %v2628 = vsub.f32 %v2343, %v2578
    %v2629 = vsub.f32 %v2369, %v2579
    %v2630 = vsub.f32 %v2395, %v2580
    %v2631 = vsub.f32 %v2421, %v2581
    %v2632 = vsub.f32 %v2447, %v2582
    %v2633 = vsub.f32 %v2473, %v2583
    %v2634 = vsub.f32 %v2499, %v2584
    %v2635 = vsub.f32 %v2525, %v2585
    %v2636 = vsub.f32 %v2551, %v2586
    %v2637 = vmul.f32 %v2612, %v2612
    %v2638 = vmul.f32 %v2613, %v2613
    %v2639 = vmul.f32 %v2614, %v2614
    %v2640 = vmul.f32 %v2615, %v2615
    %v2641 = vmul.f32 %v2616, %v2616
    %v2642 = vmul.f32 %v2617, %v2617
    %v2643 = vmul.f32 %v2618, %v2618
    %v2644 = vmul.f32 %v2619, %v2619
    %v2645 = vmul.f32 %v2620, %v2620
    %v2646 = vmul.f32 %v2621, %v2621
    %v2647 = vmul.f32 %v2622, %v2622
    %v2648 = vmul.f32 %v2623, %v2623
    %v2649 = vmul.f32 %v2624, %v2624
    %v2650 = vmul.f32 %v2625, %v2625
    %v2651 = vmul.f32 %v2626, %v2626
    %v2652 = vmul.f32 %v2627, %v2627
    %v2653 = vmul.f32 %v2628, %v2628
    %v2654 = vmul.f32 %v2629, %v2629
    %v2655 = vmul.f32 %v2630, %v2630
    %v2656 = vmul.f32 %v2631, %v2631
    %v2657 = vmul.f32 %v2632, %v2632
    %v2658 = vmul.f32 %v2633, %v2633
    %v2659 = vmul.f32 %v2634, %v2634
    %v2660 = vmul.f32 %v2635, %v2635
    %v2661 = vmul.f32 %v2636, %v2636
    %v2662 = vmul.f32 %v2637, -48.02
    %v2663 = vmul.f32 %v2638, -48.02
    %v2664 = vmul.f32 %v2639, -48.02
    %v2665 = vmul.f32 %v2640, -48.02
    %v2666 = vmul.f32 %v2641, -48.02
    %v2667 = vmul.f32 %v2642, -48.02
    %v2668 = vmul.f32 %v2643, -48.02
    %v2669 = vmul.f32 %v2644, -48.02
    %v2670 = vmul.f32 %v2645, -48.02
    %v2671 = vmul.f32 %v2646, -48.02
    %v2672 = vmul.f32 %v2647, -48.02
    %v2673 = vmul.f32 %v2648, -48.02
    %v2674 = vmul.f32 %v2649, -48.02
    %v2675 = vmul.f32 %v2650, -48.02
    %v2676 = vmul.f32 %v2651, -48.02
    %v2677 = vmul.f32 %v2652, -48.02
    %v2678 = vmul.f32 %v2653, -48.02
    %v2679 = vmul.f32 %v2654, -48.02
    %v2680 = vmul.f32 %v2655, -48.02
    %v2681 = vmul.f32 %v2656, -48.02
    %v2682 = vmul.f32 %v2657, -48.02
    %v2683 = vmul.f32 %v2658, -48.02
    %v2684 = vmul.f32 %v2659, -48.02
    %v2685 = vmul.f32 %v2660, -48.02
    %v2686 = vmul.f32 %v2661, -48.02
    %v2687 = vmul.f32 %v2662, 1.442695
    %v2688 = vpow.pop %v2687
    %v2689 = vmul.f32 %v2663, 1.442695
    %v2690 = vpow.pop %v2689
    %v2691 = vmul.f32 %v2664, 1.442695
    %v2692 = vpow.pop %v2691
    %v2693 = vmul.f32 %v2665, 1.442695
    %v2694 = vpow.pop %v2693
    %v2695 = vmul.f32 %v2666, 1.442695
    %v2696 = vpow.pop %v2695
    %v2697 = vmul.f32 %v2667, 1.442695
    %v2698 = vpow.pop %v2697
    %v2699 = vmul.f32 %v2668, 1.442695
    %v2700 = vpow.pop %v2699
    %v2701 = vmul.f32 %v2669, 1.442695
    %v2702 = vpow.pop %v2701
    %v2703 = vmul.f32 %v2670, 1.442695
    %v2704 = vpow.pop %v2703
    %v2705 = vmul.f32 %v2671, 1.442695
    %v2706 = vpow.pop %v2705
    %v2707 = vmul.f32 %v2672, 1.442695
    %v2708 = vpow.pop %v2707
    %v2709 = vmul.f32 %v2673, 1.442695
    %v2710 = vpow.pop %v2709
    %v2711 = vmul.f32 %v2674, 1.442695
    %v2712 = vpow.pop %v2711
    %v2713 = vmul.f32 %v2675, 1.442695
    %v2714 = vpow.pop %v2713
    %v2715 = vmul.f32 %v2676, 1.442695
    %v2716 = vpow.pop %v2715
    %v2717 = vmul.f32 %v2677, 1.442695
    %v2718 = vpow.pop %v2717
    %v2719 = vmul.f32 %v2678, 1.442695
    %v2720 = vpow.pop %v2719
    %v2721 = vmul.f32 %v2679, 1.442695
    %v2722 = vpow.pop %v2721
    %v2723 = vmul.f32 %v2680, 1.442695
    %v2724 = vpow.pop %v2723
    %v2725 = vmul.f32 %v2681, 1.442695
    %v2726 = vpow.pop %v2725
    %v2727 = vmul.f32 %v2682, 1.442695
    %v2728 = vpow.pop %v2727
    %v2729 = vmul.f32 %v2683, 1.442695
    %v2730 = vpow.pop %v2729
    %v2731 = vmul.f32 %v2684, 1.442695
    %v2732 = vpow.pop %v2731
    %v2733 = vmul.f32 %v2685, 1.442695
    %v2734 = vpow.pop %v2733
    %v2735 = vmul.f32 %v2686, 1.442695
    %v2736 = vpow.pop %v2735
    %2737 = vst [vmem:[#allocation8] sm:$0xff] %v2688
    %2738 = vst [vmem:[#allocation8 + $0x8] sm:$0xff] %v2690
    %2739 = vst [vmem:[#allocation8 + $0x10] sm:$0xff] %v2692
    %2740 = vst [vmem:[#allocation8 + $0x18] sm:$0xff] %v2694
    %2741 = vst [vmem:[#allocation8 + $0x20] sm:$0xff] %v2696
    %2742 = vst [vmem:[#allocation8 + $0x28] sm:$0xff] %v2698
    %2743 = vst [vmem:[#allocation8 + $0x30] sm:$0xff] %v2700
    %2744 = vst [vmem:[#allocation8 + $0x38] sm:$0xff] %v2702
    %2745 = vst [vmem:[#allocation8 + $0x40] sm:$0xff] %v2704
    %2746 = vst [vmem:[#allocation8 + $0x48] sm:$0xff] %v2706
    %2747 = vst [vmem:[#allocation8 + $0x50] sm:$0xff] %v2708
    %2748 = vst [vmem:[#allocation8 + $0x58] sm:$0xff] %v2710
    %2749 = vst [vmem:[#allocation8 + $0x60] sm:$0xff] %v2712
    %2750 = vst [vmem:[#allocation8 + $0x68] sm:$0xff] %v2714
    %2751 = vst [vmem:[#allocation8 + $0x70] sm:$0xff] %v2716
    %2752 = vst [vmem:[#allocation8 + $0x78] sm:$0xff] %v2718
    %2753 = vst [vmem:[#allocation8 + $0x80] sm:$0xff] %v2720
    %2754 = vst [vmem:[#allocation8 + $0x88] sm:$0xff] %v2722
    %2755 = vst [vmem:[#allocation8 + $0x90] sm:$0xff] %v2724
    %2756 = vst [vmem:[#allocation8 + $0x98] sm:$0xff] %v2726
    %2757 = vst [vmem:[#allocation8 + $0xa0] sm:$0xff] %v2728
    %2758 = vst [vmem:[#allocation8 + $0xa8] sm:$0xff] %v2730
    %2759 = vst [vmem:[#allocation8 + $0xb0] sm:$0xff] %v2732
    %2760 = vst [vmem:[#allocation8 + $0xb8] sm:$0xff] %v2734
    %2761 = vst [vmem:[#allocation8 + $0xc0] sm:$0xff] %v2736
    // Predicated region
    $region26: #{tpu_custom_call.1} parent=1 // pred_check
      _
    $region27: #{tpu_custom_call.1} parent=1 // pred_check_branch
      %2763 = sbr.rel (0) target = $region29
    $region28: #{tpu_custom_call.1} parent=1 // pred_region
      %2765 = vsyncadd [#allocation4], 0
      %s2767 = sshll.u32 [#allocation8], 4
      %s2768 = int_to_ptr.vmem [resolvable:$true] %s2767
      %s2769 = sshll.u32 %s3, 4
      %s2770 = int_to_ptr.hbm [resolvable:$true] %s2769
      %2772 = dma.vmem_to_hbm [thread:$0]  %s2768, 3200, %s2770, [#allocation4]
    $region29: #{tpu_custom_call.1} parent=1 // pred_fallthru
      _
    // Predicated region
    $region30: #{tpu_custom_call.1} parent=1 // pred_check
      _
    $region31: #{tpu_custom_call.1} parent=1 // pred_check_branch
      %2774 = sbr.rel (0) target = $region33
    $region32: #{tpu_custom_call.1} parent=1 // pred_region
      %2776 = dma.done [#allocation4], 3200
    $region33: #{tpu_custom_call.1} parent=1 // pred_fallthru
      _
    %2777 = vsyncpa [#allocation3], 1
    %2778 = vsyncpa [#allocation6], 1
    %2779 = vsyncpa [#allocation4], 1

</llo_original>
